<compile_context>
chip_gen: v5e
topology: v5e:2x2
jax: 0.10.0
libtpu: 0.0.40
codegen_flags: <defaults>
</compile_context>

<pallas_src>
import functools

import jax
import jax.numpy as jnp
from jax import lax
from jax.experimental import pallas as pl
from jax.experimental.pallas import tpu as pltpu

_BN_EPS = 1e-5


# ----------------------------------------------------------------------------
# Constant-operand builders (run once in the wrapper, resident in VMEM)
# ----------------------------------------------------------------------------
def _interp_matrix(out_size: int, in_size: int) -> jnp.ndarray:
    """Dense 1-D bilinear interpolation matrix (PyTorch align_corners=False)."""
    o = jnp.arange(out_size, dtype=jnp.float32)
    src = (o + 0.5) * (in_size / out_size) - 0.5
    i0 = jnp.floor(src)
    w1 = src - i0
    i0c = jnp.clip(i0, 0, in_size - 1).astype(jnp.int32)
    i1c = jnp.clip(i0 + 1.0, 0, in_size - 1).astype(jnp.int32)
    rows = jnp.arange(out_size)
    m = jnp.zeros((out_size, in_size), jnp.float32)
    m = m.at[rows, i0c].add(1.0 - w1)
    m = m.at[rows, i1c].add(w1)
    return m


def _banded_conv_weights(w_oihw, width: int) -> jnp.ndarray:
    """Fold a 3x3 conv's kw / channel structure into 3 banded matrices (one per kh).

    Rows are width-major, channel-interleaved (lane = x*C + c) with NO zero
    padding columns: left/right conv padding is the truncated eye band, so the
    contraction / output widths are exactly width*Cin / width*Cout (lane dense):
        out_row = sum_kh  in_row_shifted_by_kh @ M[kh].
    """
    cout, cin = int(w_oihw.shape[0]), int(w_oihw.shape[1])
    wk = jnp.transpose(w_oihw, (2, 3, 1, 0)).astype(jnp.float32)   # (3,3,Cin,Cout)
    mats = []
    for kh in range(3):
        m = jnp.zeros((width * cin, width * cout), jnp.float32)
        for kw in range(3):
            # output col xout reads input col xin = xout - 1 + kw
            sel = jnp.eye(width, width, k=1 - kw, dtype=jnp.float32)
            m = m + jnp.kron(sel, wk[kh, kw])
        mats.append(m)
    return jnp.stack(mats, axis=0)


def _fold_bn(b, gamma, beta, mean, var):
    scale = gamma / jnp.sqrt(var + _BN_EPS)
    shift = beta + (b - mean) * scale
    return scale.astype(jnp.float32), shift.astype(jnp.float32)


# ----------------------------------------------------------------------------
# Fused kernel: bilinear upsample + conv1/BN1/ReLU + conv2/BN2/ReLU
# ----------------------------------------------------------------------------
def _fused_kernel(x_ref, lyb_ref, g_ref, m1_ref, s1_ref, h1_ref,
                  m2_ref, s2_ref, h2_ref, mask_ref, o_ref, *,
                  h_up: int, r_blk: int, b_blk: int):
    wo = m2_ref.shape[2]
    br = b_blk * r_blk
    m1_rows = br - 2           # stage-1 rows (incl. conv2 padding + halo rows)
    m2_rows = br - 4           # stage-2 rows (image rows live inside)
    mxu_dt = m1_ref.dtype

    # ---- bilinear upsample (separable; interpolation matmuls stay f32) ------
    # W-interpolation + channel interleave for all images / rows of this block.
    z = jnp.dot(x_ref[...], g_ref[...], preferred_element_type=jnp.float32)
    # H-interpolation through the block-diagonal matrix; its zero rows provide
    # conv1's top/bottom zero padding and the inter-image separation for free.
    x_up = jnp.dot(lyb_ref[...], z, preferred_element_type=jnp.float32)
    x_up = x_up.astype(mxu_dt)                          # (BR, W*Cin) MXU operand

    # ---- conv1 (3 banded MXU matmuls) + folded BN1 + ReLU --------------------
    acc1 = jnp.zeros((m1_rows, wo), jnp.float32)
    for kh in range(3):
        acc1 = acc1 + jnp.dot(x_up[kh:kh + m1_rows, :], m1_ref[kh],
                              preferred_element_type=jnp.float32)
    act = jnp.maximum(acc1 * s1_ref[...] + h1_ref[...], 0.0)
    # Rows that must act as conv2's zero padding (image rows -1 / H_up) and the
    # inter-image halo rows are zeroed via a precomputed resident mask.
    act = (act * mask_ref[...]).astype(mxu_dt)

    # ---- conv2 (3 banded MXU matmuls) + folded BN2 + ReLU --------------------
    acc2 = jnp.zeros((m2_rows, wo), jnp.float32)
    for kh in range(3):
        acc2 = acc2 + jnp.dot(act[kh:kh + m2_rows, :], m2_ref[kh],
                              preferred_element_type=jnp.float32)
    out = jnp.maximum(acc2 * s2_ref[...] + h2_ref[...], 0.0)

    # Dropout2d(p=0.3) is identity in eval mode.  Write each image's rows.
    for b in range(b_blk):
        o_ref[b] = out[b * r_blk:b * r_blk + h_up].astype(o_ref.dtype)


# ----------------------------------------------------------------------------
# Wrappers
# ----------------------------------------------------------------------------
def up_conv2d_block_forward_nhwc(x_nhwc, params, scale_tuple, *,
                                 batch_block: int = 1,
                                 mxu_dtype=jnp.bfloat16,
                                 out_dtype=None):
    n, h_in, w_in, cin = x_nhwc.shape
    cout = params["w1"].shape[0]
    sy, sx = scale_tuple
    h_up, w_up = h_in * sy, w_in * sx
    out_dtype = x_nhwc.dtype if out_dtype is None else out_dtype

    b_blk = int(batch_block)
    assert n % b_blk == 0, "batch_block must divide the batch size"
    n_steps = n // b_blk

    wi = w_in * cin                 # input row width (lanes)
    wu = w_up * cin                 # upsampled row width (lane dense, 128 here)
    wo = w_up * cout                # output row width (lane dense, 256 here)

    # Per-image padded row block: 2 zero halo rows on top (conv padding) and
    # >=2 at the bottom, rounded so each image block is sublane (8) aligned.
    pad_bot = 2 + ((-(h_up + 4)) % 8)
    r_blk = h_up + 2 + pad_bot
    br = b_blk * r_blk
    m1_rows = br - 2
    m2_rows = br - 4

    # ---- resident constant operands -----------------------------------------
    lx = _interp_matrix(w_up, w_in)
    ly = _interp_matrix(h_up, h_in)
    g_mat = jnp.kron(lx.T, jnp.eye(cin, dtype=jnp.float32))          # (wi, wu)
    ly_pad = jnp.zeros((r_blk, h_in), jnp.float32).at[2:h_up + 2].set(ly)
    ly_blk = jnp.kron(jnp.eye(b_blk, dtype=jnp.float32), ly_pad)     # (br, b*h_in)

    m1 = _banded_conv_weights(params["w1"], w_up).astype(mxu_dtype)  # (3, wu, wo)
    m2 = _banded_conv_weights(params["w2"], w_up).astype(mxu_dtype)  # (3, wo, wo)

    sc1, sh1 = _fold_bn(params["b1"], params["gamma1"], params["beta1"],
                        params["mean1"], params["var1"])
    sc2, sh2 = _fold_bn(params["b2"], params["gamma2"], params["beta2"],
                        params["mean2"], params["var2"])
    s1 = jnp.broadcast_to(sc1[None, :], (w_up, cout)).reshape(1, wo)
    h1 = jnp.broadcast_to(sh1[None, :], (w_up, cout)).reshape(1, wo)
    s2 = jnp.broadcast_to(sc2[None, :], (w_up, cout)).reshape(1, wo)
    h2 = jnp.broadcast_to(sh2[None, :], (w_up, cout)).reshape(1, wo)

    # Stage-1 row r is an in-image row iff 1 <= (r mod r_blk) <= h_up; all other
    # rows (conv2 padding rows and inter-image halo rows) are zeroed.
    rr = jnp.arange(m1_rows) % r_blk
    mask = ((rr >= 1) & (rr <= h_up)).astype(jnp.float32)[:, None]   # (m1_rows, 1)

    x_flat = x_nhwc.reshape(n * h_in, wi).astype(jnp.float32)        # free reshape

    # ---- cost estimate (MXU work of the banded formulation) ------------------
    itemsize_mxu = jnp.dtype(mxu_dtype).itemsize
    flops_step = (2 * (b_blk * h_in) * wi * wu
                  + 2 * br * (b_blk * h_in) * wu
                  + 2 * 3 * m1_rows * wu * wo
                  + 2 * 3 * m2_rows * wo * wo)
    flops = int(n_steps * flops_step)
    const_bytes = (4 * (ly_blk.size + g_mat.size + mask.size + 4 * wo)
                   + itemsize_mxu * (m1.size + m2.size))
    bytes_accessed = int(4 * n * h_in * wi
                         + jnp.dtype(out_dtype).itemsize * n * h_up * wo
                         + const_bytes)

    kernel = functools.partial(_fused_kernel, h_up=h_up, r_blk=r_blk, b_blk=b_blk)
    resident = dict(pipeline_mode=pl.Buffered(1))   # constants: single-buffered

    out = pl.pallas_call(
        kernel,
        out_shape=jax.ShapeDtypeStruct((n, h_up, wo), out_dtype),
        grid=(n_steps,),
        in_specs=[
            pl.BlockSpec((b_blk * h_in, wi), lambda i: (i, 0)),
            pl.BlockSpec(ly_blk.shape, lambda i: (0, 0), **resident),
            pl.BlockSpec(g_mat.shape, lambda i: (0, 0), **resident),
            pl.BlockSpec(m1.shape, lambda i: (0, 0, 0), **resident),
            pl.BlockSpec(s1.shape, lambda i: (0, 0), **resident),
            pl.BlockSpec(h1.shape, lambda i: (0, 0), **resident),
            pl.BlockSpec(m2.shape, lambda i: (0, 0, 0), **resident),
            pl.BlockSpec(s2.shape, lambda i: (0, 0), **resident),
            pl.BlockSpec(h2.shape, lambda i: (0, 0), **resident),
            pl.BlockSpec(mask.shape, lambda i: (0, 0), **resident),
        ],
        out_specs=pl.BlockSpec((b_blk, h_up, wo), lambda i: (i, 0, 0)),
        compiler_params=pltpu.CompilerParams(dimension_semantics=("parallel",)),
        cost_estimate=pl.CostEstimate(flops=flops, transcendentals=0,
                                      bytes_accessed=bytes_accessed),
    )(x_flat, ly_blk, g_mat, m1, s1, h1, m2, s2, h2, mask)

    return out.reshape(n, h_up, w_up, cout)                          # free reshape


def up_conv2d_block_forward(x_nchw, params, scale_tuple, **kwargs):
    # Boundary-only layout change for PyTorch NCHW parity; the whole pipeline
    # runs NHWC-flat internally with no transposes of the large activations.
    x_nhwc = jnp.transpose(x_nchw, (0, 2, 3, 1))
    y = up_conv2d_block_forward_nhwc(x_nhwc, params, scale_tuple, **kwargs)
    return jnp.transpose(y, (0, 3, 1, 2))


# ----------------------------------------------------------------------------
# Parameters + pure-JAX reference (for correctness check)
# ----------------------------------------------------------------------------
def init_params(key, in_ch, out_ch):
    ks = jax.random.split(key, 10)
    fan1 = in_ch * 9
    fan2 = out_ch * 9
    return {
        "w1": jax.random.uniform(ks[0], (out_ch, in_ch, 3, 3), jnp.float32,
                                 -1.0, 1.0) / jnp.sqrt(fan1),
        "b1": jax.random.uniform(ks[1], (out_ch,), jnp.float32,
                                 -1.0, 1.0) / jnp.sqrt(fan1),
        "gamma1": jax.random.uniform(ks[2], (out_ch,), jnp.float32, 0.5, 1.5),
        "beta1": 0.1 * jax.random.normal(ks[3], (out_ch,), jnp.float32),
        "mean1": 0.1 * jax.random.normal(ks[4], (out_ch,), jnp.float32),
        "var1": jax.random.uniform(ks[5], (out_ch,), jnp.float32, 0.5, 1.5),
        "w2": jax.random.uniform(ks[6], (out_ch, out_ch, 3, 3), jnp.float32,
                                 -1.0, 1.0) / jnp.sqrt(fan2),
        "b2": jax.random.uniform(ks[7], (out_ch,), jnp.float32,
                                 -1.0, 1.0) / jnp.sqrt(fan2),
        "gamma2": jax.random.uniform(ks[8], (out_ch,), jnp.float32, 0.5, 1.5),
        "beta2": 0.1 * jax.random.normal(ks[9], (out_ch,), jnp.float32),
        "mean2": jnp.zeros((out_ch,), jnp.float32),
        "var2": jnp.ones((out_ch,), jnp.float32),
    }


def _reference_forward(x_nchw, params, scale_tuple):
    n, cin, h, w = x_nchw.shape
    sy, sx = scale_tuple
    ly = _interp_matrix(h * sy, h)
    lx = _interp_matrix(w * sx, w)
    x = jnp.einsum('oy,ncyx,px->ncop', ly, x_nchw.astype(jnp.float32), lx,
                   precision=lax.Precision.HIGHEST)

    def stage(x, w_, b, gamma, beta, mean, var):
        y = lax.conv_general_dilated(
            x, w_, window_strides=(1, 1), padding=((1, 1), (1, 1)),
            dimension_numbers=('NCHW', 'OIHW', 'NCHW'),
            precision=lax.Precision.HIGHEST)
        y = y + b[None, :, None, None]
        y = (y - mean[None, :, None, None]) * (
            gamma[None, :, None, None]
            / jnp.sqrt(var + _BN_EPS)[None, :, None, None]) + beta[None, :, None, None]
        return jnp.maximum(y, 0.0)

    x = stage(x, params["w1"], params["b1"], params["gamma1"], params["beta1"],
              params["mean1"], params["var1"])
    x = stage(x, params["w2"], params["b2"], params["gamma2"], params["beta2"],
              params["mean2"], params["var2"])
    return x


if __name__ == "__main__":
    # TODO(synk): Dropout2d(p=0.3) randomness and batch-statistics BatchNorm are
    # training-mode ops; this kernel implements the deterministic eval-mode
    # forward (dropout = identity, BN = running-stats affine).
    key = jax.random.PRNGKey(0)
    kx, kp = jax.random.split(key)

    N, IN_CH, OUT_CH, HW = 2, 4, 8, 16
    SCALE = (2, 2)
    x = jax.random.normal(kx, (N, IN_CH, HW, HW), jnp.float32)       # NCHW
    params = init_params(kp, IN_CH, OUT_CH)

    ref = _reference_forward(x, params, SCALE)
    H_UP, W_UP = HW * SCALE[0], HW * SCALE[1]

    # Default path: one image per grid step (parallel batch axis, v7x-friendly).
    fwd = jax.jit(functools.partial(up_conv2d_block_forward, scale_tuple=SCALE))
    out = jax.block_until_ready(fwd(x, params))
    assert out.shape == (N, OUT_CH, H_UP, W_UP), out.shape
    assert bool(jnp.all(out >= 0.0)), "ReLU violated"
    assert bool(jnp.all(jnp.isfinite(out))), "non-finite output"
    err1 = float(jnp.max(jnp.abs(out - ref)))
    assert err1 < 5e-2, f"mismatch vs reference (batch_block=1): {err1}"

    # Batch-folded path: both images stacked along the matmul M dimension in a
    # single grid step (higher MXU row occupancy); verifies the fold bookkeeping.
    fwd2 = jax.jit(functools.partial(up_conv2d_block_forward, scale_tuple=SCALE,
                                     batch_block=N))
    out2 = jax.block_until_ready(fwd2(x, params))
    assert out2.shape == (N, OUT_CH, H_UP, W_UP), out2.shape
    err2 = float(jnp.max(jnp.abs(out2 - ref)))
    assert err2 < 5e-2, f"mismatch vs reference (batch_block={N}): {err2}"

    print("KERNEL_OK")
</pallas_src>

<mosaic_0001>
module attributes {stable_mosaic.version = 11 : i64} {
  func.func @_fused_kernel(%arg0: i32, %arg1: memref<16x64xf32, #tpu.memory_space<vmem>>, %arg2: memref<40x16xf32, #tpu.memory_space<vmem>>, %arg3: memref<64x128xf32, #tpu.memory_space<vmem>>, %arg4: memref<3x128x256xbf16, #tpu.memory_space<vmem>>, %arg5: memref<1x256xf32, #tpu.memory_space<vmem>>, %arg6: memref<1x256xf32, #tpu.memory_space<vmem>>, %arg7: memref<3x256x256xbf16, #tpu.memory_space<vmem>>, %arg8: memref<1x256xf32, #tpu.memory_space<vmem>>, %arg9: memref<1x256xf32, #tpu.memory_space<vmem>>, %arg10: memref<38x1xf32, #tpu.memory_space<vmem>>, %arg11: memref<1x32x256xf32, #tpu.memory_space<vmem>>) attributes {dimension_semantics = [#tpu.dimension_semantics<parallel>], iteration_bounds = array<i64: 2>, scalar_prefetch = 0 : i64, scratch_operands = 0 : i64, tpu.core_type = #tpu.core_type<tc>, window_params = [{transform_indices = @transform_0, window_bounds = array<i64: 16, 64>}, {pipeline_mode = #tpu.pipeline_mode<synchronous>, transform_indices = @transform_1, window_bounds = array<i64: 40, 16>}, {pipeline_mode = #tpu.pipeline_mode<synchronous>, transform_indices = @transform_2, window_bounds = array<i64: 64, 128>}, {pipeline_mode = #tpu.pipeline_mode<synchronous>, transform_indices = @transform_3, window_bounds = array<i64: 3, 128, 256>}, {pipeline_mode = #tpu.pipeline_mode<synchronous>, transform_indices = @transform_4, window_bounds = array<i64: 1, 256>}, {pipeline_mode = #tpu.pipeline_mode<synchronous>, transform_indices = @transform_5, window_bounds = array<i64: 1, 256>}, {pipeline_mode = #tpu.pipeline_mode<synchronous>, transform_indices = @transform_6, window_bounds = array<i64: 3, 256, 256>}, {pipeline_mode = #tpu.pipeline_mode<synchronous>, transform_indices = @transform_7, window_bounds = array<i64: 1, 256>}, {pipeline_mode = #tpu.pipeline_mode<synchronous>, transform_indices = @transform_8, window_bounds = array<i64: 1, 256>}, {pipeline_mode = #tpu.pipeline_mode<synchronous>, transform_indices = @transform_9, window_bounds = array<i64: 38, 1>}, {transform_indices = @transform_10, window_bounds = array<i64: 1, 32, 256>}]} {
    %c0 = arith.constant 0 : index
    %c0_0 = arith.constant 0 : index
    %0 = vector.load %arg1[%c0, %c0_0] : memref<16x64xf32, #tpu.memory_space<vmem>>, vector<16x64xf32>
    %c0_1 = arith.constant 0 : index
    %c0_2 = arith.constant 0 : index
    %1 = vector.load %arg3[%c0_1, %c0_2] : memref<64x128xf32, #tpu.memory_space<vmem>>, vector<64x128xf32>
    %cst = arith.constant dense<0.000000e+00> : vector<16x128xf32>
    %2 = tpu.matmul %0, %1, %cst {dimension_numbers = #tpu.dot_dimension_numbers<[1], [0], [0], [1], [0, 0, 1, 1], [], []>} : vector<16x64xf32>, vector<64x128xf32>, vector<16x128xf32> -> vector<16x128xf32>
    %c0_3 = arith.constant 0 : index
    %c0_4 = arith.constant 0 : index
    %3 = vector.load %arg2[%c0_3, %c0_4] : memref<40x16xf32, #tpu.memory_space<vmem>>, vector<40x16xf32>
    %cst_5 = arith.constant dense<0.000000e+00> : vector<40x128xf32>
    %4 = tpu.matmul %3, %2, %cst_5 {dimension_numbers = #tpu.dot_dimension_numbers<[1], [0], [0], [1], [0, 0, 1, 1], [], []>} : vector<40x16xf32>, vector<16x128xf32>, vector<40x128xf32> -> vector<40x128xf32>
    %5 = arith.truncf %4 : vector<40x128xf32> to vector<40x128xbf16>
    %cst_6 = arith.constant 0.000000e+00 : f32
    %6 = vector.broadcast %cst_6 : f32 to vector<38x256xf32>
    %7 = vector.extract_strided_slice %5 {offsets = [0, 0], sizes = [38, 128], strides = [1, 1]} : vector<40x128xbf16> to vector<38x128xbf16>
    %c0_7 = arith.constant 0 : index
    %c0_8 = arith.constant 0 : index
    %c0_9 = arith.constant 0 : index
    %8 = vector.load %arg4[%c0_7, %c0_8, %c0_9] : memref<3x128x256xbf16, #tpu.memory_space<vmem>>, vector<1x128x256xbf16>
    %9 = vector.shape_cast %8 : vector<1x128x256xbf16> to vector<128x256xbf16>
    %cst_10 = arith.constant dense<0.000000e+00> : vector<38x256xf32>
    %10 = tpu.matmul %7, %9, %cst_10 {dimension_numbers = #tpu.dot_dimension_numbers<[1], [0], [0], [1], [0, 0, 1, 1], [], []>} : vector<38x128xbf16>, vector<128x256xbf16>, vector<38x256xf32> -> vector<38x256xf32>
    %11 = arith.addf %6, %10 : vector<38x256xf32>
    %12 = vector.extract_strided_slice %5 {offsets = [1, 0], sizes = [38, 128], strides = [1, 1]} : vector<40x128xbf16> to vector<38x128xbf16>
    %c1 = arith.constant 1 : index
    %c0_11 = arith.constant 0 : index
    %c0_12 = arith.constant 0 : index
    %13 = vector.load %arg4[%c1, %c0_11, %c0_12] : memref<3x128x256xbf16, #tpu.memory_space<vmem>>, vector<1x128x256xbf16>
    %14 = vector.shape_cast %13 : vector<1x128x256xbf16> to vector<128x256xbf16>
    %cst_13 = arith.constant dense<0.000000e+00> : vector<38x256xf32>
    %15 = tpu.matmul %12, %14, %cst_13 {dimension_numbers = #tpu.dot_dimension_numbers<[1], [0], [0], [1], [0, 0, 1, 1], [], []>} : vector<38x128xbf16>, vector<128x256xbf16>, vector<38x256xf32> -> vector<38x256xf32>
    %16 = arith.addf %11, %15 : vector<38x256xf32>
    %17 = vector.extract_strided_slice %5 {offsets = [2, 0], sizes = [38, 128], strides = [1, 1]} : vector<40x128xbf16> to vector<38x128xbf16>
    %c2 = arith.constant 2 : index
    %c0_14 = arith.constant 0 : index
    %c0_15 = arith.constant 0 : index
    %18 = vector.load %arg4[%c2, %c0_14, %c0_15] : memref<3x128x256xbf16, #tpu.memory_space<vmem>>, vector<1x128x256xbf16>
    %19 = vector.shape_cast %18 : vector<1x128x256xbf16> to vector<128x256xbf16>
    %cst_16 = arith.constant dense<0.000000e+00> : vector<38x256xf32>
    %20 = tpu.matmul %17, %19, %cst_16 {dimension_numbers = #tpu.dot_dimension_numbers<[1], [0], [0], [1], [0, 0, 1, 1], [], []>} : vector<38x128xbf16>, vector<128x256xbf16>, vector<38x256xf32> -> vector<38x256xf32>
    %21 = arith.addf %16, %20 : vector<38x256xf32>
    %c0_17 = arith.constant 0 : index
    %c0_18 = arith.constant 0 : index
    %22 = vector.load %arg5[%c0_17, %c0_18] : memref<1x256xf32, #tpu.memory_space<vmem>>, vector<1x256xf32>
    %23 = vector.broadcast %22 : vector<1x256xf32> to vector<38x256xf32>
    %24 = arith.mulf %21, %23 : vector<38x256xf32>
    %c0_19 = arith.constant 0 : index
    %c0_20 = arith.constant 0 : index
    %25 = vector.load %arg6[%c0_19, %c0_20] : memref<1x256xf32, #tpu.memory_space<vmem>>, vector<1x256xf32>
    %26 = vector.broadcast %25 : vector<1x256xf32> to vector<38x256xf32>
    %27 = arith.addf %24, %26 : vector<38x256xf32>
    %cst_21 = arith.constant 0.000000e+00 : f32
    %28 = vector.broadcast %cst_21 : f32 to vector<38x256xf32>
    %29 = arith.maximumf %27, %28 : vector<38x256xf32>
    %c0_22 = arith.constant 0 : index
    %c0_23 = arith.constant 0 : index
    %30 = vector.load %arg10[%c0_22, %c0_23] : memref<38x1xf32, #tpu.memory_space<vmem>>, vector<38x1xf32>
    %31 = vector.broadcast %30 : vector<38x1xf32> to vector<38x256xf32>
    %32 = arith.mulf %29, %31 : vector<38x256xf32>
    %33 = arith.truncf %32 : vector<38x256xf32> to vector<38x256xbf16>
    %cst_24 = arith.constant 0.000000e+00 : f32
    %34 = vector.broadcast %cst_24 : f32 to vector<36x256xf32>
    %35 = vector.extract_strided_slice %33 {offsets = [0, 0], sizes = [36, 256], strides = [1, 1]} : vector<38x256xbf16> to vector<36x256xbf16>
    %c0_25 = arith.constant 0 : index
    %c0_26 = arith.constant 0 : index
    %c0_27 = arith.constant 0 : index
    %36 = vector.load %arg7[%c0_25, %c0_26, %c0_27] : memref<3x256x256xbf16, #tpu.memory_space<vmem>>, vector<1x256x256xbf16>
    %37 = vector.shape_cast %36 : vector<1x256x256xbf16> to vector<256x256xbf16>
    %cst_28 = arith.constant dense<0.000000e+00> : vector<36x256xf32>
    %38 = tpu.matmul %35, %37, %cst_28 {dimension_numbers = #tpu.dot_dimension_numbers<[1], [0], [0], [1], [0, 0, 1, 1], [], []>} : vector<36x256xbf16>, vector<256x256xbf16>, vector<36x256xf32> -> vector<36x256xf32>
    %39 = arith.addf %34, %38 : vector<36x256xf32>
    %40 = vector.extract_strided_slice %33 {offsets = [1, 0], sizes = [36, 256], strides = [1, 1]} : vector<38x256xbf16> to vector<36x256xbf16>
    %c1_29 = arith.constant 1 : index
    %c0_30 = arith.constant 0 : index
    %c0_31 = arith.constant 0 : index
    %41 = vector.load %arg7[%c1_29, %c0_30, %c0_31] : memref<3x256x256xbf16, #tpu.memory_space<vmem>>, vector<1x256x256xbf16>
    %42 = vector.shape_cast %41 : vector<1x256x256xbf16> to vector<256x256xbf16>
    %cst_32 = arith.constant dense<0.000000e+00> : vector<36x256xf32>
    %43 = tpu.matmul %40, %42, %cst_32 {dimension_numbers = #tpu.dot_dimension_numbers<[1], [0], [0], [1], [0, 0, 1, 1], [], []>} : vector<36x256xbf16>, vector<256x256xbf16>, vector<36x256xf32> -> vector<36x256xf32>
    %44 = arith.addf %39, %43 : vector<36x256xf32>
    %45 = vector.extract_strided_slice %33 {offsets = [2, 0], sizes = [36, 256], strides = [1, 1]} : vector<38x256xbf16> to vector<36x256xbf16>
    %c2_33 = arith.constant 2 : index
    %c0_34 = arith.constant 0 : index
    %c0_35 = arith.constant 0 : index
    %46 = vector.load %arg7[%c2_33, %c0_34, %c0_35] : memref<3x256x256xbf16, #tpu.memory_space<vmem>>, vector<1x256x256xbf16>
    %47 = vector.shape_cast %46 : vector<1x256x256xbf16> to vector<256x256xbf16>
    %cst_36 = arith.constant dense<0.000000e+00> : vector<36x256xf32>
    %48 = tpu.matmul %45, %47, %cst_36 {dimension_numbers = #tpu.dot_dimension_numbers<[1], [0], [0], [1], [0, 0, 1, 1], [], []>} : vector<36x256xbf16>, vector<256x256xbf16>, vector<36x256xf32> -> vector<36x256xf32>
    %49 = arith.addf %44, %48 : vector<36x256xf32>
    %c0_37 = arith.constant 0 : index
    %c0_38 = arith.constant 0 : index
    %50 = vector.load %arg8[%c0_37, %c0_38] : memref<1x256xf32, #tpu.memory_space<vmem>>, vector<1x256xf32>
    %51 = vector.broadcast %50 : vector<1x256xf32> to vector<36x256xf32>
    %52 = arith.mulf %49, %51 : vector<36x256xf32>
    %c0_39 = arith.constant 0 : index
    %c0_40 = arith.constant 0 : index
    %53 = vector.load %arg9[%c0_39, %c0_40] : memref<1x256xf32, #tpu.memory_space<vmem>>, vector<1x256xf32>
    %54 = vector.broadcast %53 : vector<1x256xf32> to vector<36x256xf32>
    %55 = arith.addf %52, %54 : vector<36x256xf32>
    %cst_41 = arith.constant 0.000000e+00 : f32
    %56 = vector.broadcast %cst_41 : f32 to vector<36x256xf32>
    %57 = arith.maximumf %55, %56 : vector<36x256xf32>
    %58 = vector.extract_strided_slice %57 {offsets = [0, 0], sizes = [32, 256], strides = [1, 1]} : vector<36x256xf32> to vector<32x256xf32>
    %c0_42 = arith.constant 0 : index
    %c0_43 = arith.constant 0 : index
    %c0_44 = arith.constant 0 : index
    %59 = vector.load %arg11[%c0_42, %c0_43, %c0_44] : memref<1x32x256xf32, #tpu.memory_space<vmem>>, vector<1x32x256xf32>
    %60 = vector.shape_cast %59 : vector<1x32x256xf32> to vector<32x256xf32>
    %61 = vector.shape_cast %58 : vector<32x256xf32> to vector<1x32x256xf32>
    tpu.vector_store %arg11[%c0_42, %c0_43, %c0_44], %61 {strides = array<i32>} : memref<1x32x256xf32, #tpu.memory_space<vmem>>, vector<1x32x256xf32>,
    return
  }
  func.func @transform_0(%arg0: i32) -> (i32, i32) {
    %c0_i32 = arith.constant 0 : i32
    %c0_i32_0 = arith.constant 0 : i32
    return %arg0, %c0_i32 : i32, i32
  }
  func.func @transform_1(%arg0: i32) -> (i32, i32) {
    %c0_i32 = arith.constant 0 : i32
    %c0_i32_0 = arith.constant 0 : i32
    %c0_i32_1 = arith.constant 0 : i32
    return %c0_i32, %c0_i32_0 : i32, i32
  }
  func.func @transform_2(%arg0: i32) -> (i32, i32) {
    %c0_i32 = arith.constant 0 : i32
    %c0_i32_0 = arith.constant 0 : i32
    %c0_i32_1 = arith.constant 0 : i32
    return %c0_i32, %c0_i32_0 : i32, i32
  }
  func.func @transform_3(%arg0: i32) -> (i32, i32, i32) {
    %c0_i32 = arith.constant 0 : i32
    %c0_i32_0 = arith.constant 0 : i32
    %c0_i32_1 = arith.constant 0 : i32
    %c0_i32_2 = arith.constant 0 : i32
    return %c0_i32, %c0_i32_0, %c0_i32_1 : i32, i32, i32
  }
  func.func @transform_4(%arg0: i32) -> (i32, i32) {
    %c0_i32 = arith.constant 0 : i32
    %c0_i32_0 = arith.constant 0 : i32
    %c0_i32_1 = arith.constant 0 : i32
    return %c0_i32, %c0_i32_0 : i32, i32
  }
  func.func @transform_5(%arg0: i32) -> (i32, i32) {
    %c0_i32 = arith.constant 0 : i32
    %c0_i32_0 = arith.constant 0 : i32
    %c0_i32_1 = arith.constant 0 : i32
    return %c0_i32, %c0_i32_0 : i32, i32
  }
  func.func @transform_6(%arg0: i32) -> (i32, i32, i32) {
    %c0_i32 = arith.constant 0 : i32
    %c0_i32_0 = arith.constant 0 : i32
    %c0_i32_1 = arith.constant 0 : i32
    %c0_i32_2 = arith.constant 0 : i32
    return %c0_i32, %c0_i32_0, %c0_i32_1 : i32, i32, i32
  }
  func.func @transform_7(%arg0: i32) -> (i32, i32) {
    %c0_i32 = arith.constant 0 : i32
    %c0_i32_0 = arith.constant 0 : i32
    %c0_i32_1 = arith.constant 0 : i32
    return %c0_i32, %c0_i32_0 : i32, i32
  }
  func.func @transform_8(%arg0: i32) -> (i32, i32) {
    %c0_i32 = arith.constant 0 : i32
    %c0_i32_0 = arith.constant 0 : i32
    %c0_i32_1 = arith.constant 0 : i32
    return %c0_i32, %c0_i32_0 : i32, i32
  }
  func.func @transform_9(%arg0: i32) -> (i32, i32) {
    %c0_i32 = arith.constant 0 : i32
    %c0_i32_0 = arith.constant 0 : i32
    %c0_i32_1 = arith.constant 0 : i32
    return %c0_i32, %c0_i32_0 : i32, i32
  }
  func.func @transform_10(%arg0: i32) -> (i32, i32, i32) {
    %c0_i32 = arith.constant 0 : i32
    %c0_i32_0 = arith.constant 0 : i32
    %c0_i32_1 = arith.constant 0 : i32
    return %arg0, %c0_i32, %c0_i32_0 : i32, i32, i32
  }
}

</mosaic_0001>

<llo_original>
// kernel: up_conv2d_block_forward.1
$region0: #{up_conv2d_block_forward.1}
  #allocation0 [shape = 'u32[]', space=smem, size = 0x4, offset = 0x4, fixed_abs, tag = 'smem constant byte address 0x4 - core index']
  #allocation1 [shape = 'u32[72,128]{1,0:T(1,128)}', space=vmem, size = 0x9000, scoped, tag = 'internal scratch']
  %s0 = inlined_call_operand.vmem [shape: f32[32,64], index: 0, kind: input, shape index: {}]
  %s1 = inlined_call_operand.vmem [shape: f32[40,16], index: 1, kind: input, shape index: {}]
  %s2 = inlined_call_operand.vmem [shape: f32[64,128], index: 2, kind: input, shape index: {}]
  %s3 = inlined_call_operand.vmem [shape: bf16[3,128,256], index: 3, kind: input, shape index: {}]
  %s4 = inlined_call_operand.vmem [shape: f32[1,256], index: 4, kind: input, shape index: {}]
  %s5 = inlined_call_operand.vmem [shape: f32[1,256], index: 5, kind: input, shape index: {}]
  %s6 = inlined_call_operand.vmem [shape: bf16[3,256,256], index: 6, kind: input, shape index: {}]
  %s7 = inlined_call_operand.vmem [shape: f32[1,256], index: 7, kind: input, shape index: {}]
  %s8 = inlined_call_operand.vmem [shape: f32[1,256], index: 8, kind: input, shape index: {}]
  %s9 = inlined_call_operand.vmem [shape: f32[38,1], index: 9, kind: input, shape index: {}]
  %s10 = inlined_call_operand.vmem [shape: f32[2,32,256], index: 10, kind: output, shape index: {}]
  %s11 = sld [smem:[#allocation0]]
  $region73: #{up_conv2d_block_forward.1} parent=0
    _
  %s13 = ssub.s32 1, %s11
  %s14 = scalar_select 0, %s13, %s11
  loop: start=0, step=1, limit=4
  $region2: #{up_conv2d_block_forward.1} parent=0 // loop_pre_header
    _
  $region3: #{up_conv2d_block_forward.1} parent=0 // loop_header
    %s16 = sphi 0, %s20
    %p17 = scmp.ge.s32.totalorder %s16, 4
    %s26 = sphi 0, %s28
    %s29 = sphi 0, %s26
    %s30 = sphi 0, %s29
    %s46 = sphi 0, %s30
    %s50 = sphi 0, %s50
    %s52 = sphi 0, %s50
    %s53 = sphi 0, %s52
    %s67 = sphi 0, %s53
    %s71 = sphi 0, %s71
    %s73 = sphi 0, %s71
    %s74 = sphi 0, %s73
    %s88 = sphi 0, %s74
    %s92 = sphi 0, %s92
    %s94 = sphi 0, %s92
    %s95 = sphi 0, %s94
    %s109 = sphi 0, %s95
    %s113 = sphi 0, %s113
    %s115 = sphi 0, %s113
    %s116 = sphi 0, %s115
    %s130 = sphi 0, %s116
    %s134 = sphi 0, %s134
    %s136 = sphi 0, %s134
    %s137 = sphi 0, %s136
    %s151 = sphi 0, %s137
    %s155 = sphi 0, %s155
    %s157 = sphi 0, %s155
    %s158 = sphi 0, %s157
    %s172 = sphi 0, %s158
    %s176 = sphi 0, %s176
    %s178 = sphi 0, %s176
    %s179 = sphi 0, %s178
    %s193 = sphi 0, %s179
    %s197 = sphi 0, %s197
    %s199 = sphi 0, %s197
    %s200 = sphi 0, %s199
    %s214 = sphi 0, %s200
    %s218 = sphi 0, %s218
    %s220 = sphi 0, %s218
    %s221 = sphi 0, %s220
    %s235 = sphi 0, %s221
    %s241 = sphi 0, %s243
    %s244 = sphi 0, %s241
    %s245 = sphi 0, %s244
    %s261 = sphi 0, %s245
  $region4: #{up_conv2d_block_forward.1} parent=0 // loop_header_branch
    %19 = sbr.rel (%p17) target = $region8
  $region5: #{up_conv2d_block_forward.1} parent=0 // loop_body
    %s21 = ssub.s32 %s16, 1
    %s22 = ssub.s32 %s16, 2
    %s23 = sadd.s32 %s16, 1
    %s24 = ssub.s32 %s16, %s23
    %p25 = scmp.eq.s32.totalorder %s24, 0
    %s27 = sadd.s32 %s26, 1
    %s28 = scalar_select %p25, %s26, %s27
    %p31 = pneg %p25
    %p32 = scmp.eq.s32.totalorder %s16, 1
    %p33 = por %p31, %p32
    %p34 = scmp.ne.s32.totalorder %s26, %s29
    %p35 = scmp.eq.s32.totalorder %s16, 0
    %p36 = por %p34, %p35
    %p37 = scmp.ne.s32.totalorder %s26, %s29
    %p38 = scmp.eq.s32.totalorder %s21, 1
    %p39 = por %p37, %p38
    %p40 = scmp.ne.s32.totalorder %s29, %s30
    %p41 = scmp.eq.s32.totalorder %s21, 0
    %p42 = por %p40, %p41
    %p43 = scmp.ne.s32.totalorder %s29, %s30
    %p44 = scmp.eq.s32.totalorder %s22, 1
    %p45 = por %p43, %p44
    %p47 = scmp.ne.s32.totalorder %s30, %s46
    %p48 = scmp.eq.s32.totalorder %s22, 0
    %p49 = por %p47, %p48
    %s51 = sadd.s32 %s50, 1
    %p54 = scmp.eq.s32.totalorder %s16, 1
    %p55 = scmp.ne.s32.totalorder %s50, %s52
    %p56 = scmp.eq.s32.totalorder %s16, 0
    %p57 = por %p55, %p56
    %p58 = scmp.ne.s32.totalorder %s50, %s52
    %p59 = scmp.eq.s32.totalorder %s21, 1
    %p60 = por %p58, %p59
    %p61 = scmp.ne.s32.totalorder %s52, %s53
    %p62 = scmp.eq.s32.totalorder %s21, 0
    %p63 = por %p61, %p62
    %p64 = scmp.ne.s32.totalorder %s52, %s53
    %p65 = scmp.eq.s32.totalorder %s22, 1
    %p66 = por %p64, %p65
    %p68 = scmp.ne.s32.totalorder %s53, %s67
    %p69 = scmp.eq.s32.totalorder %s22, 0
    %p70 = por %p68, %p69
    %s72 = sadd.s32 %s71, 1
    %p75 = scmp.eq.s32.totalorder %s16, 1
    %p76 = scmp.ne.s32.totalorder %s71, %s73
    %p77 = scmp.eq.s32.totalorder %s16, 0
    %p78 = por %p76, %p77
    %p79 = scmp.ne.s32.totalorder %s71, %s73
    %p80 = scmp.eq.s32.totalorder %s21, 1
    %p81 = por %p79, %p80
    %p82 = scmp.ne.s32.totalorder %s73, %s74
    %p83 = scmp.eq.s32.totalorder %s21, 0
    %p84 = por %p82, %p83
    %p85 = scmp.ne.s32.totalorder %s73, %s74
    %p86 = scmp.eq.s32.totalorder %s22, 1
    %p87 = por %p85, %p86
    %p89 = scmp.ne.s32.totalorder %s74, %s88
    %p90 = scmp.eq.s32.totalorder %s22, 0
    %p91 = por %p89, %p90
    %s93 = sadd.s32 %s92, 1
    %p96 = scmp.eq.s32.totalorder %s16, 1
    %p97 = scmp.ne.s32.totalorder %s92, %s94
    %p98 = scmp.eq.s32.totalorder %s16, 0
    %p99 = por %p97, %p98
    %p100 = scmp.ne.s32.totalorder %s92, %s94
    %p101 = scmp.eq.s32.totalorder %s21, 1
    %p102 = por %p100, %p101
    %p103 = scmp.ne.s32.totalorder %s94, %s95
    %p104 = scmp.eq.s32.totalorder %s21, 0
    %p105 = por %p103, %p104
    %p106 = scmp.ne.s32.totalorder %s94, %s95
    %p107 = scmp.eq.s32.totalorder %s22, 1
    %p108 = por %p106, %p107
    %p110 = scmp.ne.s32.totalorder %s95, %s109
    %p111 = scmp.eq.s32.totalorder %s22, 0
    %p112 = por %p110, %p111
    %s114 = sadd.s32 %s113, 1
    %p117 = scmp.eq.s32.totalorder %s16, 1
    %p118 = scmp.ne.s32.totalorder %s113, %s115
    %p119 = scmp.eq.s32.totalorder %s16, 0
    %p120 = por %p118, %p119
    %p121 = scmp.ne.s32.totalorder %s113, %s115
    %p122 = scmp.eq.s32.totalorder %s21, 1
    %p123 = por %p121, %p122
    %p124 = scmp.ne.s32.totalorder %s115, %s116
    %p125 = scmp.eq.s32.totalorder %s21, 0
    %p126 = por %p124, %p125
    %p127 = scmp.ne.s32.totalorder %s115, %s116
    %p128 = scmp.eq.s32.totalorder %s22, 1
    %p129 = por %p127, %p128
    %p131 = scmp.ne.s32.totalorder %s116, %s130
    %p132 = scmp.eq.s32.totalorder %s22, 0
    %p133 = por %p131, %p132
    %s135 = sadd.s32 %s134, 1
    %p138 = scmp.eq.s32.totalorder %s16, 1
    %p139 = scmp.ne.s32.totalorder %s134, %s136
    %p140 = scmp.eq.s32.totalorder %s16, 0
    %p141 = por %p139, %p140
    %p142 = scmp.ne.s32.totalorder %s134, %s136
    %p143 = scmp.eq.s32.totalorder %s21, 1
    %p144 = por %p142, %p143
    %p145 = scmp.ne.s32.totalorder %s136, %s137
    %p146 = scmp.eq.s32.totalorder %s21, 0
    %p147 = por %p145, %p146
    %p148 = scmp.ne.s32.totalorder %s136, %s137
    %p149 = scmp.eq.s32.totalorder %s22, 1
    %p150 = por %p148, %p149
    %p152 = scmp.ne.s32.totalorder %s137, %s151
    %p153 = scmp.eq.s32.totalorder %s22, 0
    %p154 = por %p152, %p153
    %s156 = sadd.s32 %s155, 1
    %p159 = scmp.eq.s32.totalorder %s16, 1
    %p160 = scmp.ne.s32.totalorder %s155, %s157
    %p161 = scmp.eq.s32.totalorder %s16, 0
    %p162 = por %p160, %p161
    %p163 = scmp.ne.s32.totalorder %s155, %s157
    %p164 = scmp.eq.s32.totalorder %s21, 1
    %p165 = por %p163, %p164
    %p166 = scmp.ne.s32.totalorder %s157, %s158
    %p167 = scmp.eq.s32.totalorder %s21, 0
    %p168 = por %p166, %p167
    %p169 = scmp.ne.s32.totalorder %s157, %s158
    %p170 = scmp.eq.s32.totalorder %s22, 1
    %p171 = por %p169, %p170
    %p173 = scmp.ne.s32.totalorder %s158, %s172
    %p174 = scmp.eq.s32.totalorder %s22, 0
    %p175 = por %p173, %p174
    %s177 = sadd.s32 %s176, 1
    %p180 = scmp.eq.s32.totalorder %s16, 1
    %p181 = scmp.ne.s32.totalorder %s176, %s178
    %p182 = scmp.eq.s32.totalorder %s16, 0
    %p183 = por %p181, %p182
    %p184 = scmp.ne.s32.totalorder %s176, %s178
    %p185 = scmp.eq.s32.totalorder %s21, 1
    %p186 = por %p184, %p185
    %p187 = scmp.ne.s32.totalorder %s178, %s179
    %p188 = scmp.eq.s32.totalorder %s21, 0
    %p189 = por %p187, %p188
    %p190 = scmp.ne.s32.totalorder %s178, %s179
    %p191 = scmp.eq.s32.totalorder %s22, 1
    %p192 = por %p190, %p191
    %p194 = scmp.ne.s32.totalorder %s179, %s193
    %p195 = scmp.eq.s32.totalorder %s22, 0
    %p196 = por %p194, %p195
    %s198 = sadd.s32 %s197, 1
    %p201 = scmp.eq.s32.totalorder %s16, 1
    %p202 = scmp.ne.s32.totalorder %s197, %s199
    %p203 = scmp.eq.s32.totalorder %s16, 0
    %p204 = por %p202, %p203
    %p205 = scmp.ne.s32.totalorder %s197, %s199
    %p206 = scmp.eq.s32.totalorder %s21, 1
    %p207 = por %p205, %p206
    %p208 = scmp.ne.s32.totalorder %s199, %s200
    %p209 = scmp.eq.s32.totalorder %s21, 0
    %p210 = por %p208, %p209
    %p211 = scmp.ne.s32.totalorder %s199, %s200
    %p212 = scmp.eq.s32.totalorder %s22, 1
    %p213 = por %p211, %p212
    %p215 = scmp.ne.s32.totalorder %s200, %s214
    %p216 = scmp.eq.s32.totalorder %s22, 0
    %p217 = por %p215, %p216
    %s219 = sadd.s32 %s218, 1
    %p222 = scmp.eq.s32.totalorder %s16, 1
    %p223 = scmp.ne.s32.totalorder %s218, %s220
    %p224 = scmp.eq.s32.totalorder %s16, 0
    %p225 = por %p223, %p224
    %p226 = scmp.ne.s32.totalorder %s218, %s220
    %p227 = scmp.eq.s32.totalorder %s21, 1
    %p228 = por %p226, %p227
    %p229 = scmp.ne.s32.totalorder %s220, %s221
    %p230 = scmp.eq.s32.totalorder %s21, 0
    %p231 = por %p229, %p230
    %p232 = scmp.ne.s32.totalorder %s220, %s221
    %p233 = scmp.eq.s32.totalorder %s22, 1
    %p234 = por %p232, %p233
    %p236 = scmp.ne.s32.totalorder %s221, %s235
    %p237 = scmp.eq.s32.totalorder %s22, 0
    %p238 = por %p236, %p237
    %s239 = ssub.s32 %s16, %s23
    %p240 = scmp.eq.s32.totalorder %s239, 0
    %s242 = sadd.s32 %s241, 1
    %s243 = scalar_select %p240, %s241, %s242
    %p246 = pneg %p240
    %p247 = scmp.eq.s32.totalorder %s16, 1
    %p248 = por %p246, %p247
    %p249 = scmp.ne.s32.totalorder %s241, %s244
    %p250 = scmp.eq.s32.totalorder %s16, 0
    %p251 = por %p249, %p250
    %p252 = scmp.ne.s32.totalorder %s241, %s244
    %p253 = scmp.eq.s32.totalorder %s21, 1
    %p254 = por %p252, %p253
    %p255 = scmp.ne.s32.totalorder %s244, %s245
    %p256 = scmp.eq.s32.totalorder %s21, 0
    %p257 = por %p255, %p256
    %p258 = scmp.ne.s32.totalorder %s244, %s245
    %p259 = scmp.eq.s32.totalorder %s22, 1
    %p260 = por %p258, %p259
    %p262 = scmp.ne.s32.totalorder %s245, %s261
    %p263 = scmp.eq.s32.totalorder %s22, 0
    %p264 = por %p262, %p263
    %p265 = scmp.le.s32.totalorder 1, %s16
    %p266 = scmp.lt.s32.totalorder %s16, 3
    %p267 = pnand %p265, %p266
    %p268 = pneg %p267
    // Predicated region
    $region9: #{up_conv2d_block_forward.1} parent=5 // pred_check
      _
    $region10: #{up_conv2d_block_forward.1} parent=5 // pred_check_branch
      %270 = sbr.rel (%p267) target = $region12
    $region11: #{up_conv2d_block_forward.1} parent=5 // pred_region
      %s271 = ssub.s32 %s16, 1
      // Predicated region
      $region13: #{up_conv2d_block_forward.1} parent=11 // pred_check
        %p272 = pneg %p63
      $region14: #{up_conv2d_block_forward.1} parent=11 // pred_check_branch
        %274 = sbr.rel (%p272) target = $region16
      $region15: #{up_conv2d_block_forward.1} parent=11 // pred_region
        _
      $region16: #{up_conv2d_block_forward.1} parent=11 // pred_fallthru
        _
      // Predicated region
      $region17: #{up_conv2d_block_forward.1} parent=11 // pred_check
        %p275 = pneg %p84
      $region18: #{up_conv2d_block_forward.1} parent=11 // pred_check_branch
        %277 = sbr.rel (%p275) target = $region20
      $region19: #{up_conv2d_block_forward.1} parent=11 // pred_region
        _
      $region20: #{up_conv2d_block_forward.1} parent=11 // pred_fallthru
        _
      // Predicated region
      $region21: #{up_conv2d_block_forward.1} parent=11 // pred_check
        %p278 = pneg %p105
      $region22: #{up_conv2d_block_forward.1} parent=11 // pred_check_branch
        %280 = sbr.rel (%p278) target = $region24
      $region23: #{up_conv2d_block_forward.1} parent=11 // pred_region
        _
      $region24: #{up_conv2d_block_forward.1} parent=11 // pred_fallthru
        _
      // Predicated region
      $region25: #{up_conv2d_block_forward.1} parent=11 // pred_check
        %p281 = pneg %p126
      $region26: #{up_conv2d_block_forward.1} parent=11 // pred_check_branch
        %283 = sbr.rel (%p281) target = $region28
      $region27: #{up_conv2d_block_forward.1} parent=11 // pred_region
        _
      $region28: #{up_conv2d_block_forward.1} parent=11 // pred_fallthru
        _
      // Predicated region
      $region29: #{up_conv2d_block_forward.1} parent=11 // pred_check
        %p284 = pneg %p147
      $region30: #{up_conv2d_block_forward.1} parent=11 // pred_check_branch
        %286 = sbr.rel (%p284) target = $region32
      $region31: #{up_conv2d_block_forward.1} parent=11 // pred_region
        _
      $region32: #{up_conv2d_block_forward.1} parent=11 // pred_fallthru
        _
      // Predicated region
      $region33: #{up_conv2d_block_forward.1} parent=11 // pred_check
        %p287 = pneg %p168
      $region34: #{up_conv2d_block_forward.1} parent=11 // pred_check_branch
        %289 = sbr.rel (%p287) target = $region36
      $region35: #{up_conv2d_block_forward.1} parent=11 // pred_region
        _
      $region36: #{up_conv2d_block_forward.1} parent=11 // pred_fallthru
        _
      // Predicated region
      $region37: #{up_conv2d_block_forward.1} parent=11 // pred_check
        %p290 = pneg %p189
      $region38: #{up_conv2d_block_forward.1} parent=11 // pred_check_branch
        %292 = sbr.rel (%p290) target = $region40
      $region39: #{up_conv2d_block_forward.1} parent=11 // pred_region
        _
      $region40: #{up_conv2d_block_forward.1} parent=11 // pred_fallthru
        _
      // Predicated region
      $region41: #{up_conv2d_block_forward.1} parent=11 // pred_check
        %p293 = pneg %p210
      $region42: #{up_conv2d_block_forward.1} parent=11 // pred_check_branch
        %295 = sbr.rel (%p293) target = $region44
      $region43: #{up_conv2d_block_forward.1} parent=11 // pred_region
        _
      $region44: #{up_conv2d_block_forward.1} parent=11 // pred_fallthru
        _
      // Predicated region
      $region45: #{up_conv2d_block_forward.1} parent=11 // pred_check
        %p296 = pneg %p231
      $region46: #{up_conv2d_block_forward.1} parent=11 // pred_check_branch
        %298 = sbr.rel (%p296) target = $region48
      $region47: #{up_conv2d_block_forward.1} parent=11 // pred_region
        _
      $region48: #{up_conv2d_block_forward.1} parent=11 // pred_fallthru
        _
    $region12: #{up_conv2d_block_forward.1} parent=5 // pred_fallthru
      _
    %p299 = scmp.lt.s32.totalorder %s16, 2
    // Predicated region
    $region49: #{up_conv2d_block_forward.1} parent=5 // pred_check
      %p300 = pneg %p299
    $region50: #{up_conv2d_block_forward.1} parent=5 // pred_check_branch
      %302 = sbr.rel (%p300) target = $region52
    $region51: #{up_conv2d_block_forward.1} parent=5 // pred_region
      // Predicated region
      $region53: #{up_conv2d_block_forward.1} parent=51 // pred_check
        %p303 = pneg %p36
      $region54: #{up_conv2d_block_forward.1} parent=51 // pred_check_branch
        %305 = sbr.rel (%p303) target = $region56
      $region55: #{up_conv2d_block_forward.1} parent=51 // pred_region
        %s306 = smul.u32 2, %s16
        %p307 = scmp.lt.s32.totalorder %s306, 3
        %s308 = scalar_select %p307, %s306, 3
        %s309 = smul.addr %s308, 8
        %s310 = scalar_lea.vmem %s0, %s309
        %s311 = smul.u32 2, %s16
      $region56: #{up_conv2d_block_forward.1} parent=51 // pred_fallthru
        _
    $region52: #{up_conv2d_block_forward.1} parent=5 // pred_fallthru
      _
    %p312 = scmp.le.s32.totalorder 1, %s16
    %p313 = scmp.lt.s32.totalorder %s16, 3
    %p314 = pnand %p312, %p313
    %p315 = pneg %p314
    // Predicated region
    $region57: #{up_conv2d_block_forward.1} parent=5 // pred_check
      _
    $region58: #{up_conv2d_block_forward.1} parent=5 // pred_check_branch
      %317 = sbr.rel (%p314) target = $region60
    $region59: #{up_conv2d_block_forward.1} parent=5 // pred_region
      %s318 = ssub.s32 %s16, 1
      %s319 = smul.u32 2, %s21
      %p320 = scmp.lt.s32.totalorder %s319, 3
      %s321 = scalar_select %p320, %s319, 3
      %s322 = smul.addr %s321, 8
      %s323 = scalar_lea.vmem %s0, %s322
      %p324 = pneg %p42
      %p325 = pneg %p39
      %p326 = pneg %p63
      %p327 = pneg %p60
      %p328 = pneg %p84
      %p329 = pneg %p81
      %p330 = pneg %p105
      %p331 = pneg %p102
      %p332 = pneg %p126
      %p333 = pneg %p123
      %p334 = pneg %p147
      %p335 = pneg %p144
      %p336 = pneg %p168
      %p337 = pneg %p165
      %p338 = pneg %p189
      %p339 = pneg %p186
      %p340 = pneg %p210
      %p341 = pneg %p207
      %p342 = pneg %p231
      %p343 = pneg %p228
      %p344 = pneg %p257
      %p345 = pneg %p254
      %p346 = scmp.lt.s32.totalorder %s21, 1
      %s347 = scalar_select %p346, %s21, 1
      %s348 = smul.addr %s347, 8
      %s349 = smul.addr %s348, 8
      %s350 = scalar_lea.vmem %s10, %s349
      %s351 = smul.u32 2, %s21
      %p352 = scmp.lt.s32.totalorder %s351, 3
      %s353 = scalar_select %p352, %s351, 3
      %s354 = smul.addr %s353, 8
      %s355 = scalar_lea.vmem %s0, %s354
      %s356 = smul.u32 2, %s21
      %p357 = scmp.lt.s32.totalorder %s21, 1
      %s358 = scalar_select %p357, %s21, 1
      %s359 = smul.addr %s358, 8
      %s360 = smul.addr %s359, 8
      %s361 = scalar_lea.vmem %s10, %s360
      %v362 = vld [vmem:[%s355] sm:$0xff]
      %v363 = vld [vmem:[%s355 + $0x8] sm:$0xff]
      %v364 = vld [vmem:[%s2] sm:$0xff]
      %v365 = vld [vmem:[%s2 + $0x8] sm:$0xff]
      %v366 = vld [vmem:[%s2 + $0x10] sm:$0xff]
      %v367 = vld [vmem:[%s2 + $0x18] sm:$0xff]
      %v368 = vld [vmem:[%s2 + $0x20] sm:$0xff]
      %v369 = vld [vmem:[%s2 + $0x28] sm:$0xff]
      %v370 = vld [vmem:[%s2 + $0x30] sm:$0xff]
      %v371 = vld [vmem:[%s2 + $0x38] sm:$0xff]
      %vm372 = vcmask 523264
      %v374 = vsel %vm372, %v362, 0
      %v377 = vsel %vm372, %v363, 0
      %379 = vmatpush.msra.mxu0 0.0
      %380 = vmatpush.msra.mxu0 0.0
      %381 = vmatpush.msra.mxu0 0.0
      %382 = vmatpush.msra.mxu0 0.0
      %383 = vmatpush.msra.mxu0 0.0
      %384 = vmatpush.msra.mxu0 0.0
      %385 = vmatpush.msra.mxu0 0.0
      %386 = vmatpush.msra.mxu0 0.0
      %387 = vmatpush.msra.mxu0 %v371
      %388 = vmatpush.msra.mxu0 %v370
      %389 = vmatpush.msra.mxu0 %v369
      %390 = vmatpush.msra.mxu0 %v368
      %391 = vmatpush.msra.mxu0 %v367
      %392 = vmatpush.msra.mxu0 %v366
      %393 = vmatpush.msra.mxu0 %v365
      %394 = vmatpush.msra.mxu0 %v364
      %395 = vmatmul.f32.gmra.mxu0 %v374
      %v396 = vpop.f32.mrf.mxu0
      %v397 = vadd.f32 0.0, %v396
      %398 = vmatmul.f32.gmra.mxu0 %v377
      %v399 = vpop.f32.mrf.mxu0
      %v400 = vadd.f32 0.0, %v399
      %401 = vdwg.mxu0
      %v402 = vld [vmem:[%s1] sm:$0xff]
      %v403 = vld [vmem:[%s1 + $0x8] sm:$0xff]
      %v404 = vld [vmem:[%s1 + $0x10] sm:$0xff]
      %v405 = vld [vmem:[%s1 + $0x18] sm:$0xff]
      %v406 = vld [vmem:[%s1 + $0x20] sm:$0xff]
      %vm407 = vcmask 130048
      %v409 = vsel %vm407, %v402, 0
      %v412 = vsel %vm407, %v403, 0
      %v415 = vsel %vm407, %v404, 0
      %v418 = vsel %vm407, %v405, 0
      %v421 = vsel %vm407, %v406, 0
      %423 = vmatpush.msra.mxu0 0.0
      %424 = vmatpush.msra.mxu0 0.0
      %425 = vmatpush.msra.mxu0 0.0
      %426 = vmatpush.msra.mxu0 0.0
      %427 = vmatpush.msra.mxu0 0.0
      %428 = vmatpush.msra.mxu0 0.0
      %429 = vmatpush.msra.mxu0 0.0
      %430 = vmatpush.msra.mxu0 0.0
      %431 = vmatpush.msra.mxu0 0.0
      %432 = vmatpush.msra.mxu0 0.0
      %433 = vmatpush.msra.mxu0 0.0
      %434 = vmatpush.msra.mxu0 0.0
      %435 = vmatpush.msra.mxu0 0.0
      %436 = vmatpush.msra.mxu0 0.0
      %437 = vmatpush.msra.mxu0 %v400
      %438 = vmatpush.msra.mxu0 %v397
      %439 = vmatmul.f32.gmra.mxu0 %v409
      %v440 = vpop.f32.mrf.mxu0
      %v441 = vadd.f32 0.0, %v440
      %442 = vmatmul.f32.gmra.mxu0 %v412
      %v443 = vpop.f32.mrf.mxu0
      %v444 = vadd.f32 0.0, %v443
      %445 = vmatmul.f32.gmra.mxu0 %v415
      %v446 = vpop.f32.mrf.mxu0
      %v447 = vadd.f32 0.0, %v446
      %448 = vmatmul.f32.gmra.mxu0 %v418
      %v449 = vpop.f32.mrf.mxu0
      %v450 = vadd.f32 0.0, %v449
      %451 = vmatmul.f32.gmra.mxu0 %v421
      %v452 = vpop.f32.mrf.mxu0
      %v453 = vadd.f32 0.0, %v452
      %454 = vdwg.mxu0
      %v455 = vpack.c.bf16 %v441, %v441
      %v456 = vpack.c.bf16 %v444, %v444
      %v457 = vpack.c.bf16 %v447, %v447
      %v458 = vpack.c.bf16 %v450, %v450
      %v459 = vpack.c.bf16 %v453, %v453
      %v460 = vld [vmem:[%s3] sm:$0xff]
      %v461 = vld [vmem:[%s3 + $0x8] sm:$0xff]
      %v462 = vld [vmem:[%s3 + $0x10] sm:$0xff]
      %v463 = vld [vmem:[%s3 + $0x18] sm:$0xff]
      %v464 = vld [vmem:[%s3 + $0x20] sm:$0xff]
      %v465 = vld [vmem:[%s3 + $0x28] sm:$0xff]
      %v466 = vld [vmem:[%s3 + $0x30] sm:$0xff]
      %v467 = vld [vmem:[%s3 + $0x38] sm:$0xff]
      %v468 = vld [vmem:[%s3 + $0x40] sm:$0xff]
      %v469 = vld [vmem:[%s3 + $0x48] sm:$0xff]
      %v470 = vld [vmem:[%s3 + $0x50] sm:$0xff]
      %v471 = vld [vmem:[%s3 + $0x58] sm:$0xff]
      %v472 = vld [vmem:[%s3 + $0x60] sm:$0xff]
      %v473 = vld [vmem:[%s3 + $0x68] sm:$0xff]
      %v474 = vld [vmem:[%s3 + $0x70] sm:$0xff]
      %v475 = vld [vmem:[%s3 + $0x78] sm:$0xff]
      %s476 = scalar_lea.vmem %s3, 128
      %v477 = vld [vmem:[%s476] sm:$0xff]
      %v478 = vld [vmem:[%s476 + $0x8] sm:$0xff]
      %v479 = vld [vmem:[%s476 + $0x10] sm:$0xff]
      %v480 = vld [vmem:[%s476 + $0x18] sm:$0xff]
      %v481 = vld [vmem:[%s476 + $0x20] sm:$0xff]
      %v482 = vld [vmem:[%s476 + $0x28] sm:$0xff]
      %v483 = vld [vmem:[%s476 + $0x30] sm:$0xff]
      %v484 = vld [vmem:[%s476 + $0x38] sm:$0xff]
      %v485 = vld [vmem:[%s476 + $0x40] sm:$0xff]
      %v486 = vld [vmem:[%s476 + $0x48] sm:$0xff]
      %v487 = vld [vmem:[%s476 + $0x50] sm:$0xff]
      %v488 = vld [vmem:[%s476 + $0x58] sm:$0xff]
      %v489 = vld [vmem:[%s476 + $0x60] sm:$0xff]
      %v490 = vld [vmem:[%s476 + $0x68] sm:$0xff]
      %v491 = vld [vmem:[%s476 + $0x70] sm:$0xff]
      %v492 = vld [vmem:[%s476 + $0x78] sm:$0xff]
      %v498 = vunpack.c.l.b16 %v455
      %v499 = vunpack.c.l.b16 %v456
      %v500 = vunpack.c.l.b16 %v457
      %v501 = vunpack.c.l.b16 %v458
      %v502 = vunpack.c.l.b16 %v459
      %v503 = vpack.c.b16 %v499, %v498
      %v504 = vpack.c.b16 %v501, %v500
      %v505 = vpack.c.b16 %v502, %v502
      %vm506 = vsmask.f32 7424
      %v508 = vshrl.u32 %v503, 16
      %v510 = vshll.u32 %v503, 16
      %v512 = vrot.slane %v510, 1
      %v513 = vor.u32 %v508, %v512
      %v515 = vshll.u32 %v504, 16
      %v517 = vrot.slane %v515, 1
      %v518 = vsel %vm506, %v513, %v517
      %v519 = vshrl.u32 %v504, 16
      %v521 = vor.u32 %v519, %v517
      %v523 = vshll.u32 %v505, 16
      %v525 = vrot.slane %v523, 1
      %v526 = vsel %vm506, %v521, %v525
      %v527 = vshrl.u32 %v505, 16
      %v529 = vor.u32 %v527, %v525
      %v549 = vunpack.c.l.b16 %v477
      %v550 = vunpack.c.h.b16 %v477
      %v551 = vunpack.c.l.b16 %v478
      %v552 = vunpack.c.h.b16 %v478
      %v553 = vunpack.c.l.b16 %v479
      %v554 = vunpack.c.h.b16 %v479
      %v555 = vunpack.c.l.b16 %v480
      %v556 = vunpack.c.h.b16 %v480
      %v557 = vunpack.c.l.b16 %v481
      %v558 = vunpack.c.h.b16 %v481
      %v559 = vunpack.c.l.b16 %v482
      %v560 = vunpack.c.h.b16 %v482
      %v561 = vunpack.c.l.b16 %v483
      %v562 = vunpack.c.h.b16 %v483
      %v563 = vunpack.c.l.b16 %v484
      %v564 = vunpack.c.h.b16 %v484
      %v565 = vunpack.c.l.b16 %v485
      %v566 = vunpack.c.h.b16 %v485
      %v567 = vunpack.c.l.b16 %v486
      %v568 = vunpack.c.h.b16 %v486
      %v569 = vunpack.c.l.b16 %v487
      %v570 = vunpack.c.h.b16 %v487
      %v571 = vunpack.c.l.b16 %v488
      %v572 = vunpack.c.h.b16 %v488
      %v573 = vunpack.c.l.b16 %v489
      %v574 = vunpack.c.h.b16 %v489
      %v575 = vunpack.c.l.b16 %v490
      %v576 = vunpack.c.h.b16 %v490
      %v577 = vunpack.c.l.b16 %v491
      %v578 = vunpack.c.h.b16 %v491
      %v579 = vunpack.c.l.b16 %v492
      %v580 = vunpack.c.h.b16 %v492
      %v581 = vpack.c.b16 %v551, %v549
      %v582 = vpack.c.b16 %v552, %v550
      %v583 = vpack.c.b16 %v555, %v553
      %v584 = vpack.c.b16 %v556, %v554
      %v585 = vpack.c.b16 %v559, %v557
      %v586 = vpack.c.b16 %v560, %v558
      %v587 = vpack.c.b16 %v563, %v561
      %v588 = vpack.c.b16 %v564, %v562
      %v589 = vpack.c.b16 %v567, %v565
      %v590 = vpack.c.b16 %v568, %v566
      %v591 = vpack.c.b16 %v571, %v569
      %v592 = vpack.c.b16 %v572, %v570
      %v593 = vpack.c.b16 %v575, %v573
      %v594 = vpack.c.b16 %v576, %v574
      %v595 = vpack.c.b16 %v579, %v577
      %v596 = vpack.c.b16 %v580, %v578
      %613 = vmatpush.bf16.msra.mxu0 %v595
      %614 = vmatpush.bf16.msra.mxu0 %v593
      %615 = vmatpush.bf16.msra.mxu0 %v591
      %616 = vmatpush.bf16.msra.mxu0 %v589
      %617 = vmatpush.bf16.msra.mxu0 %v587
      %618 = vmatpush.bf16.msra.mxu0 %v585
      %619 = vmatpush.bf16.msra.mxu0 %v583
      %620 = vmatpush.bf16.msra.mxu0 %v581
      %621 = vmatmul.bf16.gmra.mxu0 %v518
      %v622 = vpop.f32.mrf.mxu0
      %v623 = vadd.f32 0.0, %v622
      %v624 = vpop.f32.mrf.mxu0
      %v625 = vadd.f32 0.0, %v624
      %626 = vmatmul.bf16.gmra.mxu0 %v526
      %v627 = vpop.f32.mrf.mxu0
      %v628 = vadd.f32 0.0, %v627
      %v629 = vpop.f32.mrf.mxu0
      %v630 = vadd.f32 0.0, %v629
      %631 = vmatmul.bf16.gmra.mxu0 %v529
      %v632 = vpop.f32.mrf.mxu0
      %v633 = vadd.f32 0.0, %v632
      %v634 = vpop.f32.mrf.mxu0
      %635 = vdwg.mxu0
      %636 = vmatpush.bf16.msra.mxu0 %v596
      %637 = vmatpush.bf16.msra.mxu0 %v594
      %638 = vmatpush.bf16.msra.mxu0 %v592
      %639 = vmatpush.bf16.msra.mxu0 %v590
      %640 = vmatpush.bf16.msra.mxu0 %v588
      %641 = vmatpush.bf16.msra.mxu0 %v586
      %642 = vmatpush.bf16.msra.mxu0 %v584
      %643 = vmatpush.bf16.msra.mxu0 %v582
      %644 = vmatmul.bf16.gmra.mxu0 %v518
      %v645 = vpop.f32.mrf.mxu0
      %v646 = vadd.f32 0.0, %v645
      %v647 = vpop.f32.mrf.mxu0
      %v648 = vadd.f32 0.0, %v647
      %649 = vmatmul.bf16.gmra.mxu0 %v526
      %v650 = vpop.f32.mrf.mxu0
      %v651 = vadd.f32 0.0, %v650
      %v652 = vpop.f32.mrf.mxu0
      %v653 = vadd.f32 0.0, %v652
      %654 = vmatmul.bf16.gmra.mxu0 %v529
      %v655 = vpop.f32.mrf.mxu0
      %v656 = vadd.f32 0.0, %v655
      %v657 = vpop.f32.mrf.mxu0
      %658 = vdwg.mxu0
      %v678 = vunpack.c.l.b16 %v460
      %v679 = vunpack.c.h.b16 %v460
      %v680 = vunpack.c.l.b16 %v461
      %v681 = vunpack.c.h.b16 %v461
      %v682 = vunpack.c.l.b16 %v462
      %v683 = vunpack.c.h.b16 %v462
      %v684 = vunpack.c.l.b16 %v463
      %v685 = vunpack.c.h.b16 %v463
      %v686 = vunpack.c.l.b16 %v464
      %v687 = vunpack.c.h.b16 %v464
      %v688 = vunpack.c.l.b16 %v465
      %v689 = vunpack.c.h.b16 %v465
      %v690 = vunpack.c.l.b16 %v466
      %v691 = vunpack.c.h.b16 %v466
      %v692 = vunpack.c.l.b16 %v467
      %v693 = vunpack.c.h.b16 %v467
      %v694 = vunpack.c.l.b16 %v468
      %v695 = vunpack.c.h.b16 %v468
      %v696 = vunpack.c.l.b16 %v469
      %v697 = vunpack.c.h.b16 %v469
      %v698 = vunpack.c.l.b16 %v470
      %v699 = vunpack.c.h.b16 %v470
      %v700 = vunpack.c.l.b16 %v471
      %v701 = vunpack.c.h.b16 %v471
      %v702 = vunpack.c.l.b16 %v472
      %v703 = vunpack.c.h.b16 %v472
      %v704 = vunpack.c.l.b16 %v473
      %v705 = vunpack.c.h.b16 %v473
      %v706 = vunpack.c.l.b16 %v474
      %v707 = vunpack.c.h.b16 %v474
      %v708 = vunpack.c.l.b16 %v475
      %v709 = vunpack.c.h.b16 %v475
      %v710 = vpack.c.b16 %v680, %v678
      %v711 = vpack.c.b16 %v681, %v679
      %v712 = vpack.c.b16 %v684, %v682
      %v713 = vpack.c.b16 %v685, %v683
      %v714 = vpack.c.b16 %v688, %v686
      %v715 = vpack.c.b16 %v689, %v687
      %v716 = vpack.c.b16 %v692, %v690
      %v717 = vpack.c.b16 %v693, %v691
      %v718 = vpack.c.b16 %v696, %v694
      %v719 = vpack.c.b16 %v697, %v695
      %v720 = vpack.c.b16 %v700, %v698
      %v721 = vpack.c.b16 %v701, %v699
      %v722 = vpack.c.b16 %v704, %v702
      %v723 = vpack.c.b16 %v705, %v703
      %v724 = vpack.c.b16 %v708, %v706
      %v725 = vpack.c.b16 %v709, %v707
      %742 = vmatpush.bf16.msra.mxu0 %v724
      %743 = vmatpush.bf16.msra.mxu0 %v722
      %744 = vmatpush.bf16.msra.mxu0 %v720
      %745 = vmatpush.bf16.msra.mxu0 %v718
      %746 = vmatpush.bf16.msra.mxu0 %v716
      %747 = vmatpush.bf16.msra.mxu0 %v714
      %748 = vmatpush.bf16.msra.mxu0 %v712
      %749 = vmatpush.bf16.msra.mxu0 %v710
      %750 = vmatmul.bf16.gmra.mxu0 %v503
      %v751 = vpop.f32.mrf.mxu0
      %v752 = vadd.f32 %v623, %v751
      %v753 = vpop.f32.mrf.mxu0
      %v754 = vadd.f32 %v625, %v753
      %755 = vmatmul.bf16.gmra.mxu0 %v504
      %v756 = vpop.f32.mrf.mxu0
      %v757 = vadd.f32 %v628, %v756
      %v758 = vpop.f32.mrf.mxu0
      %v759 = vadd.f32 %v630, %v758
      %760 = vmatmul.bf16.gmra.mxu0 %v505
      %v761 = vpop.f32.mrf.mxu0
      %v762 = vadd.f32 %v633, %v761
      %v763 = vpop.f32.mrf.mxu0
      %764 = vdwg.mxu0
      %765 = vmatpush.bf16.msra.mxu0 %v725
      %766 = vmatpush.bf16.msra.mxu0 %v723
      %767 = vmatpush.bf16.msra.mxu0 %v721
      %768 = vmatpush.bf16.msra.mxu0 %v719
      %769 = vmatpush.bf16.msra.mxu0 %v717
      %770 = vmatpush.bf16.msra.mxu0 %v715
      %771 = vmatpush.bf16.msra.mxu0 %v713
      %772 = vmatpush.bf16.msra.mxu0 %v711
      %773 = vmatmul.bf16.gmra.mxu0 %v503
      %v774 = vpop.f32.mrf.mxu0
      %v775 = vadd.f32 %v646, %v774
      %v776 = vpop.f32.mrf.mxu0
      %v777 = vadd.f32 %v648, %v776
      %778 = vmatmul.bf16.gmra.mxu0 %v504
      %v779 = vpop.f32.mrf.mxu0
      %v780 = vadd.f32 %v651, %v779
      %v781 = vpop.f32.mrf.mxu0
      %v782 = vadd.f32 %v653, %v781
      %783 = vmatmul.bf16.gmra.mxu0 %v505
      %v784 = vpop.f32.mrf.mxu0
      %v785 = vadd.f32 %v656, %v784
      %v786 = vpop.f32.mrf.mxu0
      %787 = vdwg.mxu0
      %s788 = scalar_lea.vmem %s3, 256
      %v789 = vld [vmem:[%s788] sm:$0xff]
      %v790 = vld [vmem:[%s788 + $0x8] sm:$0xff]
      %v791 = vld [vmem:[%s788 + $0x10] sm:$0xff]
      %v792 = vld [vmem:[%s788 + $0x18] sm:$0xff]
      %v793 = vld [vmem:[%s788 + $0x20] sm:$0xff]
      %v794 = vld [vmem:[%s788 + $0x28] sm:$0xff]
      %v795 = vld [vmem:[%s788 + $0x30] sm:$0xff]
      %v796 = vld [vmem:[%s788 + $0x38] sm:$0xff]
      %v797 = vld [vmem:[%s788 + $0x40] sm:$0xff]
      %v798 = vld [vmem:[%s788 + $0x48] sm:$0xff]
      %v799 = vld [vmem:[%s788 + $0x50] sm:$0xff]
      %v800 = vld [vmem:[%s788 + $0x58] sm:$0xff]
      %v801 = vld [vmem:[%s788 + $0x60] sm:$0xff]
      %v802 = vld [vmem:[%s788 + $0x68] sm:$0xff]
      %v803 = vld [vmem:[%s788 + $0x70] sm:$0xff]
      %v804 = vld [vmem:[%s788 + $0x78] sm:$0xff]
      %vm805 = vcmask 1046528
      %v806 = vrot.slane %v503, 1
      %v807 = vrot.slane %v504, 1
      %v808 = vsel %vm805, %v806, %v807
      %v809 = vrot.slane %v505, 1
      %v810 = vsel %vm805, %v807, %v809
      %v830 = vunpack.c.l.b16 %v789
      %v831 = vunpack.c.h.b16 %v789
      %v832 = vunpack.c.l.b16 %v790
      %v833 = vunpack.c.h.b16 %v790
      %v834 = vunpack.c.l.b16 %v791
      %v835 = vunpack.c.h.b16 %v791
      %v836 = vunpack.c.l.b16 %v792
      %v837 = vunpack.c.h.b16 %v792
      %v838 = vunpack.c.l.b16 %v793
      %v839 = vunpack.c.h.b16 %v793
      %v840 = vunpack.c.l.b16 %v794
      %v841 = vunpack.c.h.b16 %v794
      %v842 = vunpack.c.l.b16 %v795
      %v843 = vunpack.c.h.b16 %v795
      %v844 = vunpack.c.l.b16 %v796
      %v845 = vunpack.c.h.b16 %v796
      %v846 = vunpack.c.l.b16 %v797
      %v847 = vunpack.c.h.b16 %v797
      %v848 = vunpack.c.l.b16 %v798
      %v849 = vunpack.c.h.b16 %v798
      %v850 = vunpack.c.l.b16 %v799
      %v851 = vunpack.c.h.b16 %v799
      %v852 = vunpack.c.l.b16 %v800
      %v853 = vunpack.c.h.b16 %v800
      %v854 = vunpack.c.l.b16 %v801
      %v855 = vunpack.c.h.b16 %v801
      %v856 = vunpack.c.l.b16 %v802
      %v857 = vunpack.c.h.b16 %v802
      %v858 = vunpack.c.l.b16 %v803
      %v859 = vunpack.c.h.b16 %v803
      %v860 = vunpack.c.l.b16 %v804
      %v861 = vunpack.c.h.b16 %v804
      %v862 = vpack.c.b16 %v832, %v830
      %v863 = vpack.c.b16 %v833, %v831
      %v864 = vpack.c.b16 %v836, %v834
      %v865 = vpack.c.b16 %v837, %v835
      %v866 = vpack.c.b16 %v840, %v838
      %v867 = vpack.c.b16 %v841, %v839
      %v868 = vpack.c.b16 %v844, %v842
      %v869 = vpack.c.b16 %v845, %v843
      %v870 = vpack.c.b16 %v848, %v846
      %v871 = vpack.c.b16 %v849, %v847
      %v872 = vpack.c.b16 %v852, %v850
      %v873 = vpack.c.b16 %v853, %v851
      %v874 = vpack.c.b16 %v856, %v854
      %v875 = vpack.c.b16 %v857, %v855
      %v876 = vpack.c.b16 %v860, %v858
      %v877 = vpack.c.b16 %v861, %v859
      %894 = vmatpush.bf16.msra.mxu0 %v876
      %895 = vmatpush.bf16.msra.mxu0 %v874
      %896 = vmatpush.bf16.msra.mxu0 %v872
      %897 = vmatpush.bf16.msra.mxu0 %v870
      %898 = vmatpush.bf16.msra.mxu0 %v868
      %899 = vmatpush.bf16.msra.mxu0 %v866
      %900 = vmatpush.bf16.msra.mxu0 %v864
      %901 = vmatpush.bf16.msra.mxu0 %v862
      %902 = vmatmul.bf16.gmra.mxu0 %v808
      %v903 = vpop.f32.mrf.mxu0
      %v904 = vadd.f32 0.0, %v903
      %v905 = vpop.f32.mrf.mxu0
      %v906 = vadd.f32 0.0, %v905
      %907 = vmatmul.bf16.gmra.mxu0 %v810
      %v908 = vpop.f32.mrf.mxu0
      %v909 = vadd.f32 0.0, %v908
      %v910 = vpop.f32.mrf.mxu0
      %v911 = vadd.f32 0.0, %v910
      %912 = vmatmul.bf16.gmra.mxu0 %v809
      %v913 = vpop.f32.mrf.mxu0
      %v914 = vadd.f32 0.0, %v913
      %v915 = vpop.f32.mrf.mxu0
      %916 = vdwg.mxu0
      %917 = vmatpush.bf16.msra.mxu0 %v877
      %918 = vmatpush.bf16.msra.mxu0 %v875
      %919 = vmatpush.bf16.msra.mxu0 %v873
      %920 = vmatpush.bf16.msra.mxu0 %v871
      %921 = vmatpush.bf16.msra.mxu0 %v869
      %922 = vmatpush.bf16.msra.mxu0 %v867
      %923 = vmatpush.bf16.msra.mxu0 %v865
      %924 = vmatpush.bf16.msra.mxu0 %v863
      %925 = vmatmul.bf16.gmra.mxu0 %v808
      %v926 = vpop.f32.mrf.mxu0
      %v927 = vadd.f32 0.0, %v926
      %v928 = vpop.f32.mrf.mxu0
      %v929 = vadd.f32 0.0, %v928
      %930 = vmatmul.bf16.gmra.mxu0 %v810
      %v931 = vpop.f32.mrf.mxu0
      %v932 = vadd.f32 0.0, %v931
      %v933 = vpop.f32.mrf.mxu0
      %v934 = vadd.f32 0.0, %v933
      %935 = vmatmul.bf16.gmra.mxu0 %v809
      %v936 = vpop.f32.mrf.mxu0
      %v937 = vadd.f32 0.0, %v936
      %v938 = vpop.f32.mrf.mxu0
      %939 = vdwg.mxu0
      %v940 = vadd.f32 %v752, %v904
      %v941 = vadd.f32 %v775, %v927
      %v942 = vadd.f32 %v754, %v906
      %v943 = vadd.f32 %v777, %v929
      %v944 = vadd.f32 %v757, %v909
      %v945 = vadd.f32 %v780, %v932
      %v946 = vadd.f32 %v759, %v911
      %v947 = vadd.f32 %v782, %v934
      %v948 = vadd.f32 %v762, %v914
      %v949 = vadd.f32 %v785, %v937
      %v950 = vld [vmem:[%s4] sm:$0x3]
      %v952 = vperm.slane %v950, 0
      %v953 = vperm.slane %v950, 1
      %v956 = vmul.f32 %v940, %v952
      %v957 = vmul.f32 %v941, %v953
      %v958 = vmul.f32 %v942, %v952
      %v959 = vmul.f32 %v943, %v953
      %v960 = vmul.f32 %v944, %v952
      %v961 = vmul.f32 %v945, %v953
      %v962 = vmul.f32 %v946, %v952
      %v963 = vmul.f32 %v947, %v953
      %v964 = vmul.f32 %v948, %v952
      %v965 = vmul.f32 %v949, %v953
      %v966 = vld [vmem:[%s5] sm:$0x3]
      %v968 = vperm.slane %v966, 0
      %v969 = vperm.slane %v966, 1
      %v972 = vadd.f32 %v956, %v968
      %v973 = vadd.f32 %v957, %v969
      %v974 = vadd.f32 %v958, %v968
      %v975 = vadd.f32 %v959, %v969
      %v976 = vadd.f32 %v960, %v968
      %v977 = vadd.f32 %v961, %v969
      %v978 = vadd.f32 %v962, %v968
      %v979 = vadd.f32 %v963, %v969
      %v980 = vadd.f32 %v964, %v968
      %v981 = vadd.f32 %v965, %v969
      %v982 = vmax.f32 %v972, 0.0
      %v983 = vmax.f32 %v973, 0.0
      %v984 = vmax.f32 %v974, 0.0
      %v985 = vmax.f32 %v975, 0.0
      %v986 = vmax.f32 %v976, 0.0
      %v987 = vmax.f32 %v977, 0.0
      %v988 = vmax.f32 %v978, 0.0
      %v989 = vmax.f32 %v979, 0.0
      %v990 = vmax.f32 %v980, 0.0
      %v991 = vmax.f32 %v981, 0.0
      %v992 = vld [vmem:[%s9] sm:$0xff]
      %v993 = vld [vmem:[%s9 + $0x8] sm:$0xff]
      %v994 = vld [vmem:[%s9 + $0x10] sm:$0xff]
      %v995 = vld [vmem:[%s9 + $0x18] sm:$0xff]
      %v996 = vld [vmem:[%s9 + $0x20] sm:$0x3f]
      %998 = vset.pattern.permute.xlu0 0
      %999 = vperm.xlu0 %998, %v992
      %v1000 = vpop.permute.xlu0 %999
      %1003 = vset.pattern.permute.xlu0 0
      %1004 = vperm.xlu0 %1003, %v993
      %v1005 = vpop.permute.xlu0 %1004
      %1008 = vset.pattern.permute.xlu0 0
      %1009 = vperm.xlu0 %1008, %v994
      %v1010 = vpop.permute.xlu0 %1009
      %1013 = vset.pattern.permute.xlu0 0
      %1014 = vperm.xlu0 %1013, %v995
      %v1015 = vpop.permute.xlu0 %1014
      %1018 = vset.pattern.permute.xlu0 0
      %1019 = vperm.xlu0 %1018, %v996
      %v1020 = vpop.permute.xlu0 %1019
      %v1022 = vmul.f32 %v982, %v1000
      %v1023 = vmul.f32 %v983, %v1000
      %v1024 = vmul.f32 %v984, %v1005
      %v1025 = vmul.f32 %v985, %v1005
      %v1026 = vmul.f32 %v986, %v1010
      %v1027 = vmul.f32 %v987, %v1010
      %v1028 = vmul.f32 %v988, %v1015
      %v1029 = vmul.f32 %v989, %v1015
      %v1030 = vmul.f32 %v990, %v1020
      %v1031 = vmul.f32 %v991, %v1020
      %v1032 = vpack.c.bf16 %v1023, %v1022
      %v1033 = vpack.c.bf16 %v1025, %v1024
      %v1034 = vpack.c.bf16 %v1027, %v1026
      %v1035 = vpack.c.bf16 %v1029, %v1028
      %v1036 = vpack.c.bf16 %v1031, %v1030
      %v1037 = vld [vmem:[%s6] sm:$0xff]
      %v1038 = vld [vmem:[%s6 + $0x8] sm:$0xff]
      %v1039 = vld [vmem:[%s6 + $0x10] sm:$0xff]
      %v1040 = vld [vmem:[%s6 + $0x18] sm:$0xff]
      %v1041 = vld [vmem:[%s6 + $0x20] sm:$0xff]
      %v1042 = vld [vmem:[%s6 + $0x28] sm:$0xff]
      %v1043 = vld [vmem:[%s6 + $0x30] sm:$0xff]
      %v1044 = vld [vmem:[%s6 + $0x38] sm:$0xff]
      %v1045 = vld [vmem:[%s6 + $0x40] sm:$0xff]
      %v1046 = vld [vmem:[%s6 + $0x48] sm:$0xff]
      %v1047 = vld [vmem:[%s6 + $0x50] sm:$0xff]
      %v1048 = vld [vmem:[%s6 + $0x58] sm:$0xff]
      %v1049 = vld [vmem:[%s6 + $0x60] sm:$0xff]
      %v1050 = vld [vmem:[%s6 + $0x68] sm:$0xff]
      %v1051 = vld [vmem:[%s6 + $0x70] sm:$0xff]
      %v1052 = vld [vmem:[%s6 + $0x78] sm:$0xff]
      %v1053 = vld [vmem:[%s6 + $0x80] sm:$0xff]
      %v1054 = vld [vmem:[%s6 + $0x88] sm:$0xff]
      %v1055 = vld [vmem:[%s6 + $0x90] sm:$0xff]
      %v1056 = vld [vmem:[%s6 + $0x98] sm:$0xff]
      %v1057 = vld [vmem:[%s6 + $0xa0] sm:$0xff]
      %v1058 = vld [vmem:[%s6 + $0xa8] sm:$0xff]
      %v1059 = vld [vmem:[%s6 + $0xb0] sm:$0xff]
      %v1060 = vld [vmem:[%s6 + $0xb8] sm:$0xff]
      %v1061 = vld [vmem:[%s6 + $0xc0] sm:$0xff]
      %v1062 = vld [vmem:[%s6 + $0xc8] sm:$0xff]
      %v1063 = vld [vmem:[%s6 + $0xd0] sm:$0xff]
      %v1064 = vld [vmem:[%s6 + $0xd8] sm:$0xff]
      %v1065 = vld [vmem:[%s6 + $0xe0] sm:$0xff]
      %v1066 = vld [vmem:[%s6 + $0xe8] sm:$0xff]
      %v1067 = vld [vmem:[%s6 + $0xf0] sm:$0xff]
      %v1068 = vld [vmem:[%s6 + $0xf8] sm:$0xff]
      %s1069 = scalar_lea.vmem %s6, 256
      %v1070 = vld [vmem:[%s1069] sm:$0xff]
      %v1071 = vld [vmem:[%s1069 + $0x8] sm:$0xff]
      %v1072 = vld [vmem:[%s1069 + $0x10] sm:$0xff]
      %v1073 = vld [vmem:[%s1069 + $0x18] sm:$0xff]
      %v1074 = vld [vmem:[%s1069 + $0x20] sm:$0xff]
      %v1075 = vld [vmem:[%s1069 + $0x28] sm:$0xff]
      %v1076 = vld [vmem:[%s1069 + $0x30] sm:$0xff]
      %v1077 = vld [vmem:[%s1069 + $0x38] sm:$0xff]
      %v1078 = vld [vmem:[%s1069 + $0x40] sm:$0xff]
      %v1079 = vld [vmem:[%s1069 + $0x48] sm:$0xff]
      %v1080 = vld [vmem:[%s1069 + $0x50] sm:$0xff]
      %v1081 = vld [vmem:[%s1069 + $0x58] sm:$0xff]
      %v1082 = vld [vmem:[%s1069 + $0x60] sm:$0xff]
      %v1083 = vld [vmem:[%s1069 + $0x68] sm:$0xff]
      %v1084 = vld [vmem:[%s1069 + $0x70] sm:$0xff]
      %v1085 = vld [vmem:[%s1069 + $0x78] sm:$0xff]
      %v1086 = vld [vmem:[%s1069 + $0x80] sm:$0xff]
      %v1087 = vld [vmem:[%s1069 + $0x88] sm:$0xff]
      %v1088 = vld [vmem:[%s1069 + $0x90] sm:$0xff]
      %v1089 = vld [vmem:[%s1069 + $0x98] sm:$0xff]
      %v1090 = vld [vmem:[%s1069 + $0xa0] sm:$0xff]
      %v1091 = vld [vmem:[%s1069 + $0xa8] sm:$0xff]
      %v1092 = vld [vmem:[%s1069 + $0xb0] sm:$0xff]
      %v1093 = vld [vmem:[%s1069 + $0xb8] sm:$0xff]
      %v1094 = vld [vmem:[%s1069 + $0xc0] sm:$0xff]
      %v1095 = vld [vmem:[%s1069 + $0xc8] sm:$0xff]
      %v1096 = vld [vmem:[%s1069 + $0xd0] sm:$0xff]
      %v1097 = vld [vmem:[%s1069 + $0xd8] sm:$0xff]
      %v1098 = vld [vmem:[%s1069 + $0xe0] sm:$0xff]
      %v1099 = vld [vmem:[%s1069 + $0xe8] sm:$0xff]
      %v1100 = vld [vmem:[%s1069 + $0xf0] sm:$0xff]
      %v1101 = vld [vmem:[%s1069 + $0xf8] sm:$0xff]
      %v1107 = vunpack.c.l.b16 %v1032
      %v1108 = vunpack.c.h.b16 %v1032
      %v1109 = vunpack.c.l.b16 %v1033
      %v1110 = vunpack.c.h.b16 %v1033
      %v1111 = vunpack.c.l.b16 %v1034
      %v1112 = vunpack.c.h.b16 %v1034
      %v1113 = vunpack.c.l.b16 %v1035
      %v1114 = vunpack.c.h.b16 %v1035
      %v1115 = vunpack.c.l.b16 %v1036
      %v1116 = vunpack.c.h.b16 %v1036
      %v1117 = vpack.c.b16 %v1109, %v1107
      %v1118 = vpack.c.b16 %v1110, %v1108
      %v1119 = vpack.c.b16 %v1113, %v1111
      %v1120 = vpack.c.b16 %v1114, %v1112
      %v1121 = vpack.c.b16 %v1115, %v1115
      %v1122 = vpack.c.b16 %v1116, %v1116
      %v1124 = vshrl.u32 %v1117, 16
      %v1126 = vshll.u32 %v1117, 16
      %v1128 = vrot.slane %v1126, 1
      %v1129 = vor.u32 %v1124, %v1128
      %v1131 = vshll.u32 %v1119, 16
      %v1133 = vrot.slane %v1131, 1
      %v1134 = vsel %vm506, %v1129, %v1133
      %v1136 = vshrl.u32 %v1118, 16
      %v1138 = vshll.u32 %v1118, 16
      %v1140 = vrot.slane %v1138, 1
      %v1141 = vor.u32 %v1136, %v1140
      %v1143 = vshll.u32 %v1120, 16
      %v1145 = vrot.slane %v1143, 1
      %v1146 = vsel %vm506, %v1141, %v1145
      %v1147 = vshrl.u32 %v1119, 16
      %v1149 = vor.u32 %v1147, %v1133
      %v1151 = vshll.u32 %v1121, 16
      %v1153 = vrot.slane %v1151, 1
      %v1154 = vsel %vm506, %v1149, %v1153
      %v1155 = vshrl.u32 %v1120, 16
      %v1157 = vor.u32 %v1155, %v1145
      %v1159 = vshll.u32 %v1122, 16
      %v1161 = vrot.slane %v1159, 1
      %v1162 = vsel %vm506, %v1157, %v1161
      %v1163 = vshrl.u32 %v1121, 16
      %v1165 = vor.u32 %v1163, %v1153
      %v1166 = vshrl.u32 %v1122, 16
      %v1168 = vor.u32 %v1166, %v1161
      %v1207 = vunpack.c.l.b16 %v1070
      %v1208 = vunpack.c.h.b16 %v1070
      %v1209 = vunpack.c.l.b16 %v1071
      %v1210 = vunpack.c.h.b16 %v1071
      %v1211 = vunpack.c.l.b16 %v1072
      %v1212 = vunpack.c.h.b16 %v1072
      %v1213 = vunpack.c.l.b16 %v1073
      %v1214 = vunpack.c.h.b16 %v1073
      %v1215 = vunpack.c.l.b16 %v1074
      %v1216 = vunpack.c.h.b16 %v1074
      %v1217 = vunpack.c.l.b16 %v1075
      %v1218 = vunpack.c.h.b16 %v1075
      %v1219 = vunpack.c.l.b16 %v1076
      %v1220 = vunpack.c.h.b16 %v1076
      %v1221 = vunpack.c.l.b16 %v1077
      %v1222 = vunpack.c.h.b16 %v1077
      %v1223 = vunpack.c.l.b16 %v1078
      %v1224 = vunpack.c.h.b16 %v1078
      %v1225 = vunpack.c.l.b16 %v1079
      %v1226 = vunpack.c.h.b16 %v1079
      %v1227 = vunpack.c.l.b16 %v1080
      %v1228 = vunpack.c.h.b16 %v1080
      %v1229 = vunpack.c.l.b16 %v1081
      %v1230 = vunpack.c.h.b16 %v1081
      %v1231 = vunpack.c.l.b16 %v1082
      %v1232 = vunpack.c.h.b16 %v1082
      %v1233 = vunpack.c.l.b16 %v1083
      %v1234 = vunpack.c.h.b16 %v1083
      %v1235 = vunpack.c.l.b16 %v1084
      %v1236 = vunpack.c.h.b16 %v1084
      %v1237 = vunpack.c.l.b16 %v1085
      %v1238 = vunpack.c.h.b16 %v1085
      %v1239 = vunpack.c.l.b16 %v1086
      %v1240 = vunpack.c.h.b16 %v1086
      %v1241 = vunpack.c.l.b16 %v1087
      %v1242 = vunpack.c.h.b16 %v1087
      %v1243 = vunpack.c.l.b16 %v1088
      %v1244 = vunpack.c.h.b16 %v1088
      %v1245 = vunpack.c.l.b16 %v1089
      %v1246 = vunpack.c.h.b16 %v1089
      %v1247 = vunpack.c.l.b16 %v1090
      %v1248 = vunpack.c.h.b16 %v1090
      %v1249 = vunpack.c.l.b16 %v1091
      %v1250 = vunpack.c.h.b16 %v1091
      %v1251 = vunpack.c.l.b16 %v1092
      %v1252 = vunpack.c.h.b16 %v1092
      %v1253 = vunpack.c.l.b16 %v1093
      %v1254 = vunpack.c.h.b16 %v1093
      %v1255 = vunpack.c.l.b16 %v1094
      %v1256 = vunpack.c.h.b16 %v1094
      %v1257 = vunpack.c.l.b16 %v1095
      %v1258 = vunpack.c.h.b16 %v1095
      %v1259 = vunpack.c.l.b16 %v1096
      %v1260 = vunpack.c.h.b16 %v1096
      %v1261 = vunpack.c.l.b16 %v1097
      %v1262 = vunpack.c.h.b16 %v1097
      %v1263 = vunpack.c.l.b16 %v1098
      %v1264 = vunpack.c.h.b16 %v1098
      %v1265 = vunpack.c.l.b16 %v1099
      %v1266 = vunpack.c.h.b16 %v1099
      %v1267 = vunpack.c.l.b16 %v1100
      %v1268 = vunpack.c.h.b16 %v1100
      %v1269 = vunpack.c.l.b16 %v1101
      %v1270 = vunpack.c.h.b16 %v1101
      %v1271 = vpack.c.b16 %v1209, %v1207
      %v1272 = vpack.c.b16 %v1210, %v1208
      %v1273 = vpack.c.b16 %v1213, %v1211
      %v1274 = vpack.c.b16 %v1214, %v1212
      %v1275 = vpack.c.b16 %v1217, %v1215
      %v1276 = vpack.c.b16 %v1218, %v1216
      %v1277 = vpack.c.b16 %v1221, %v1219
      %v1278 = vpack.c.b16 %v1222, %v1220
      %v1279 = vpack.c.b16 %v1225, %v1223
      %v1280 = vpack.c.b16 %v1226, %v1224
      %v1281 = vpack.c.b16 %v1229, %v1227
      %v1282 = vpack.c.b16 %v1230, %v1228
      %v1283 = vpack.c.b16 %v1233, %v1231
      %v1284 = vpack.c.b16 %v1234, %v1232
      %v1285 = vpack.c.b16 %v1237, %v1235
      %v1286 = vpack.c.b16 %v1238, %v1236
      %v1287 = vpack.c.b16 %v1241, %v1239
      %v1288 = vpack.c.b16 %v1242, %v1240
      %v1289 = vpack.c.b16 %v1245, %v1243
      %v1290 = vpack.c.b16 %v1246, %v1244
      %v1291 = vpack.c.b16 %v1249, %v1247
      %v1292 = vpack.c.b16 %v1250, %v1248
      %v1293 = vpack.c.b16 %v1253, %v1251
      %v1294 = vpack.c.b16 %v1254, %v1252
      %v1295 = vpack.c.b16 %v1257, %v1255
      %v1296 = vpack.c.b16 %v1258, %v1256
      %v1297 = vpack.c.b16 %v1261, %v1259
      %v1298 = vpack.c.b16 %v1262, %v1260
      %v1299 = vpack.c.b16 %v1265, %v1263
      %v1300 = vpack.c.b16 %v1266, %v1264
      %v1301 = vpack.c.b16 %v1269, %v1267
      %v1302 = vpack.c.b16 %v1270, %v1268
      %1335 = vmatpush.bf16.msra.mxu0 %v1285
      %1336 = vmatpush.bf16.msra.mxu0 %v1283
      %1337 = vmatpush.bf16.msra.mxu0 %v1281
      %1338 = vmatpush.bf16.msra.mxu0 %v1279
      %1339 = vmatpush.bf16.msra.mxu0 %v1277
      %1340 = vmatpush.bf16.msra.mxu0 %v1275
      %1341 = vmatpush.bf16.msra.mxu0 %v1273
      %1342 = vmatpush.bf16.msra.mxu0 %v1271
      %1343 = vmatmul.bf16.gmra.mxu0 %v1134
      %v1344 = vpop.f32.mrf.mxu0
      %v1345 = vadd.f32 0.0, %v1344
      %v1346 = vpop.f32.mrf.mxu0
      %v1347 = vadd.f32 0.0, %v1346
      %1348 = vmatmul.bf16.gmra.mxu0 %v1154
      %v1349 = vpop.f32.mrf.mxu0
      %v1350 = vadd.f32 0.0, %v1349
      %v1351 = vpop.f32.mrf.mxu0
      %v1352 = vadd.f32 0.0, %v1351
      %1353 = vmatmul.bf16.gmra.mxu0 %v1165
      %v1354 = vpop.f32.mrf.mxu0
      %v1355 = vpop.f32.mrf.mxu0
      %1356 = vdwg.mxu0
      %1357 = vmatpush.bf16.msra.mxu0 %v1301
      %1358 = vmatpush.bf16.msra.mxu0 %v1299
      %1359 = vmatpush.bf16.msra.mxu0 %v1297
      %1360 = vmatpush.bf16.msra.mxu0 %v1295
      %1361 = vmatpush.bf16.msra.mxu0 %v1293
      %1362 = vmatpush.bf16.msra.mxu0 %v1291
      %1363 = vmatpush.bf16.msra.mxu0 %v1289
      %1364 = vmatpush.bf16.msra.mxu0 %v1287
      %1365 = vmatmul.bf16.gmra.mxu0 %v1146
      %v1366 = vpop.f32.mrf.mxu0
      %v1367 = vadd.f32 %v1345, %v1366
      %v1368 = vpop.f32.mrf.mxu0
      %v1369 = vadd.f32 %v1347, %v1368
      %1370 = vmatmul.bf16.gmra.mxu0 %v1162
      %v1371 = vpop.f32.mrf.mxu0
      %v1372 = vadd.f32 %v1350, %v1371
      %v1373 = vpop.f32.mrf.mxu0
      %v1374 = vadd.f32 %v1352, %v1373
      %1375 = vmatmul.bf16.gmra.mxu0 %v1168
      %v1376 = vpop.f32.mrf.mxu0
      %v1377 = vpop.f32.mrf.mxu0
      %1378 = vdwg.mxu0
      %1379 = vmatpush.bf16.msra.mxu0 %v1286
      %1380 = vmatpush.bf16.msra.mxu0 %v1284
      %1381 = vmatpush.bf16.msra.mxu0 %v1282
      %1382 = vmatpush.bf16.msra.mxu0 %v1280
      %1383 = vmatpush.bf16.msra.mxu0 %v1278
      %1384 = vmatpush.bf16.msra.mxu0 %v1276
      %1385 = vmatpush.bf16.msra.mxu0 %v1274
      %1386 = vmatpush.bf16.msra.mxu0 %v1272
      %1387 = vmatmul.bf16.gmra.mxu0 %v1134
      %v1388 = vpop.f32.mrf.mxu0
      %v1389 = vadd.f32 0.0, %v1388
      %v1390 = vpop.f32.mrf.mxu0
      %v1391 = vadd.f32 0.0, %v1390
      %1392 = vmatmul.bf16.gmra.mxu0 %v1154
      %v1393 = vpop.f32.mrf.mxu0
      %v1394 = vadd.f32 0.0, %v1393
      %v1395 = vpop.f32.mrf.mxu0
      %v1396 = vadd.f32 0.0, %v1395
      %1397 = vmatmul.bf16.gmra.mxu0 %v1165
      %v1398 = vpop.f32.mrf.mxu0
      %v1399 = vpop.f32.mrf.mxu0
      %1400 = vdwg.mxu0
      %1401 = vmatpush.bf16.msra.mxu0 %v1302
      %1402 = vmatpush.bf16.msra.mxu0 %v1300
      %1403 = vmatpush.bf16.msra.mxu0 %v1298
      %1404 = vmatpush.bf16.msra.mxu0 %v1296
      %1405 = vmatpush.bf16.msra.mxu0 %v1294
      %1406 = vmatpush.bf16.msra.mxu0 %v1292
      %1407 = vmatpush.bf16.msra.mxu0 %v1290
      %1408 = vmatpush.bf16.msra.mxu0 %v1288
      %1409 = vmatmul.bf16.gmra.mxu0 %v1146
      %v1410 = vpop.f32.mrf.mxu0
      %v1411 = vadd.f32 %v1389, %v1410
      %v1412 = vpop.f32.mrf.mxu0
      %v1413 = vadd.f32 %v1391, %v1412
      %1414 = vmatmul.bf16.gmra.mxu0 %v1162
      %v1415 = vpop.f32.mrf.mxu0
      %v1416 = vadd.f32 %v1394, %v1415
      %v1417 = vpop.f32.mrf.mxu0
      %v1418 = vadd.f32 %v1396, %v1417
      %1419 = vmatmul.bf16.gmra.mxu0 %v1168
      %v1420 = vpop.f32.mrf.mxu0
      %v1421 = vpop.f32.mrf.mxu0
      %1422 = vdwg.mxu0
      %v1461 = vunpack.c.l.b16 %v1037
      %v1462 = vunpack.c.h.b16 %v1037
      %v1463 = vunpack.c.l.b16 %v1038
      %v1464 = vunpack.c.h.b16 %v1038
      %v1465 = vunpack.c.l.b16 %v1039
      %v1466 = vunpack.c.h.b16 %v1039
      %v1467 = vunpack.c.l.b16 %v1040
      %v1468 = vunpack.c.h.b16 %v1040
      %v1469 = vunpack.c.l.b16 %v1041
      %v1470 = vunpack.c.h.b16 %v1041
      %v1471 = vunpack.c.l.b16 %v1042
      %v1472 = vunpack.c.h.b16 %v1042
      %v1473 = vunpack.c.l.b16 %v1043
      %v1474 = vunpack.c.h.b16 %v1043
      %v1475 = vunpack.c.l.b16 %v1044
      %v1476 = vunpack.c.h.b16 %v1044
      %v1477 = vunpack.c.l.b16 %v1045
      %v1478 = vunpack.c.h.b16 %v1045
      %v1479 = vunpack.c.l.b16 %v1046
      %v1480 = vunpack.c.h.b16 %v1046
      %v1481 = vunpack.c.l.b16 %v1047
      %v1482 = vunpack.c.h.b16 %v1047
      %v1483 = vunpack.c.l.b16 %v1048
      %v1484 = vunpack.c.h.b16 %v1048
      %v1485 = vunpack.c.l.b16 %v1049
      %v1486 = vunpack.c.h.b16 %v1049
      %v1487 = vunpack.c.l.b16 %v1050
      %v1488 = vunpack.c.h.b16 %v1050
      %v1489 = vunpack.c.l.b16 %v1051
      %v1490 = vunpack.c.h.b16 %v1051
      %v1491 = vunpack.c.l.b16 %v1052
      %v1492 = vunpack.c.h.b16 %v1052
      %v1493 = vunpack.c.l.b16 %v1053
      %v1494 = vunpack.c.h.b16 %v1053
      %v1495 = vunpack.c.l.b16 %v1054
      %v1496 = vunpack.c.h.b16 %v1054
      %v1497 = vunpack.c.l.b16 %v1055
      %v1498 = vunpack.c.h.b16 %v1055
      %v1499 = vunpack.c.l.b16 %v1056
      %v1500 = vunpack.c.h.b16 %v1056
      %v1501 = vunpack.c.l.b16 %v1057
      %v1502 = vunpack.c.h.b16 %v1057
      %v1503 = vunpack.c.l.b16 %v1058
      %v1504 = vunpack.c.h.b16 %v1058
      %v1505 = vunpack.c.l.b16 %v1059
      %v1506 = vunpack.c.h.b16 %v1059
      %v1507 = vunpack.c.l.b16 %v1060
      %v1508 = vunpack.c.h.b16 %v1060
      %v1509 = vunpack.c.l.b16 %v1061
      %v1510 = vunpack.c.h.b16 %v1061
      %v1511 = vunpack.c.l.b16 %v1062
      %v1512 = vunpack.c.h.b16 %v1062
      %v1513 = vunpack.c.l.b16 %v1063
      %v1514 = vunpack.c.h.b16 %v1063
      %v1515 = vunpack.c.l.b16 %v1064
      %v1516 = vunpack.c.h.b16 %v1064
      %v1517 = vunpack.c.l.b16 %v1065
      %v1518 = vunpack.c.h.b16 %v1065
      %v1519 = vunpack.c.l.b16 %v1066
      %v1520 = vunpack.c.h.b16 %v1066
      %v1521 = vunpack.c.l.b16 %v1067
      %v1522 = vunpack.c.h.b16 %v1067
      %v1523 = vunpack.c.l.b16 %v1068
      %v1524 = vunpack.c.h.b16 %v1068
      %v1525 = vpack.c.b16 %v1463, %v1461
      %v1526 = vpack.c.b16 %v1464, %v1462
      %v1527 = vpack.c.b16 %v1467, %v1465
      %v1528 = vpack.c.b16 %v1468, %v1466
      %v1529 = vpack.c.b16 %v1471, %v1469
      %v1530 = vpack.c.b16 %v1472, %v1470
      %v1531 = vpack.c.b16 %v1475, %v1473
      %v1532 = vpack.c.b16 %v1476, %v1474
      %v1533 = vpack.c.b16 %v1479, %v1477
      %v1534 = vpack.c.b16 %v1480, %v1478
      %v1535 = vpack.c.b16 %v1483, %v1481
      %v1536 = vpack.c.b16 %v1484, %v1482
      %v1537 = vpack.c.b16 %v1487, %v1485
      %v1538 = vpack.c.b16 %v1488, %v1486
      %v1539 = vpack.c.b16 %v1491, %v1489
      %v1540 = vpack.c.b16 %v1492, %v1490
      %v1541 = vpack.c.b16 %v1495, %v1493
      %v1542 = vpack.c.b16 %v1496, %v1494
      %v1543 = vpack.c.b16 %v1499, %v1497
      %v1544 = vpack.c.b16 %v1500, %v1498
      %v1545 = vpack.c.b16 %v1503, %v1501
      %v1546 = vpack.c.b16 %v1504, %v1502
      %v1547 = vpack.c.b16 %v1507, %v1505
      %v1548 = vpack.c.b16 %v1508, %v1506
      %v1549 = vpack.c.b16 %v1511, %v1509
      %v1550 = vpack.c.b16 %v1512, %v1510
      %v1551 = vpack.c.b16 %v1515, %v1513
      %v1552 = vpack.c.b16 %v1516, %v1514
      %v1553 = vpack.c.b16 %v1519, %v1517
      %v1554 = vpack.c.b16 %v1520, %v1518
      %v1555 = vpack.c.b16 %v1523, %v1521
      %v1556 = vpack.c.b16 %v1524, %v1522
      %1589 = vmatpush.bf16.msra.mxu0 %v1539
      %1590 = vmatpush.bf16.msra.mxu0 %v1537
      %1591 = vmatpush.bf16.msra.mxu0 %v1535
      %1592 = vmatpush.bf16.msra.mxu0 %v1533
      %1593 = vmatpush.bf16.msra.mxu0 %v1531
      %1594 = vmatpush.bf16.msra.mxu0 %v1529
      %1595 = vmatpush.bf16.msra.mxu0 %v1527
      %1596 = vmatpush.bf16.msra.mxu0 %v1525
      %1597 = vmatmul.bf16.gmra.mxu0 %v1117
      %v1598 = vpop.f32.mrf.mxu0
      %v1599 = vadd.f32 %v1367, %v1598
      %v1600 = vpop.f32.mrf.mxu0
      %v1601 = vadd.f32 %v1369, %v1600
      %1602 = vmatmul.bf16.gmra.mxu0 %v1119
      %v1603 = vpop.f32.mrf.mxu0
      %v1604 = vadd.f32 %v1372, %v1603
      %v1605 = vpop.f32.mrf.mxu0
      %v1606 = vadd.f32 %v1374, %v1605
      %1607 = vmatmul.bf16.gmra.mxu0 %v1121
      %v1608 = vpop.f32.mrf.mxu0
      %v1609 = vpop.f32.mrf.mxu0
      %1610 = vdwg.mxu0
      %1611 = vmatpush.bf16.msra.mxu0 %v1555
      %1612 = vmatpush.bf16.msra.mxu0 %v1553
      %1613 = vmatpush.bf16.msra.mxu0 %v1551
      %1614 = vmatpush.bf16.msra.mxu0 %v1549
      %1615 = vmatpush.bf16.msra.mxu0 %v1547
      %1616 = vmatpush.bf16.msra.mxu0 %v1545
      %1617 = vmatpush.bf16.msra.mxu0 %v1543
      %1618 = vmatpush.bf16.msra.mxu0 %v1541
      %1619 = vmatmul.bf16.gmra.mxu0 %v1118
      %v1620 = vpop.f32.mrf.mxu0
      %v1621 = vadd.f32 %v1599, %v1620
      %v1622 = vpop.f32.mrf.mxu0
      %v1623 = vadd.f32 %v1601, %v1622
      %1624 = vmatmul.bf16.gmra.mxu0 %v1120
      %v1625 = vpop.f32.mrf.mxu0
      %v1626 = vadd.f32 %v1604, %v1625
      %v1627 = vpop.f32.mrf.mxu0
      %v1628 = vadd.f32 %v1606, %v1627
      %1629 = vmatmul.bf16.gmra.mxu0 %v1122
      %v1630 = vpop.f32.mrf.mxu0
      %v1631 = vpop.f32.mrf.mxu0
      %1632 = vdwg.mxu0
      %1633 = vmatpush.bf16.msra.mxu0 %v1540
      %1634 = vmatpush.bf16.msra.mxu0 %v1538
      %1635 = vmatpush.bf16.msra.mxu0 %v1536
      %1636 = vmatpush.bf16.msra.mxu0 %v1534
      %1637 = vmatpush.bf16.msra.mxu0 %v1532
      %1638 = vmatpush.bf16.msra.mxu0 %v1530
      %1639 = vmatpush.bf16.msra.mxu0 %v1528
      %1640 = vmatpush.bf16.msra.mxu0 %v1526
      %1641 = vmatmul.bf16.gmra.mxu0 %v1117
      %v1642 = vpop.f32.mrf.mxu0
      %v1643 = vadd.f32 %v1411, %v1642
      %v1644 = vpop.f32.mrf.mxu0
      %v1645 = vadd.f32 %v1413, %v1644
      %1646 = vmatmul.bf16.gmra.mxu0 %v1119
      %v1647 = vpop.f32.mrf.mxu0
      %v1648 = vadd.f32 %v1416, %v1647
      %v1649 = vpop.f32.mrf.mxu0
      %v1650 = vadd.f32 %v1418, %v1649
      %1651 = vmatmul.bf16.gmra.mxu0 %v1121
      %v1652 = vpop.f32.mrf.mxu0
      %v1653 = vpop.f32.mrf.mxu0
      %1654 = vdwg.mxu0
      %1655 = vmatpush.bf16.msra.mxu0 %v1556
      %1656 = vmatpush.bf16.msra.mxu0 %v1554
      %1657 = vmatpush.bf16.msra.mxu0 %v1552
      %1658 = vmatpush.bf16.msra.mxu0 %v1550
      %1659 = vmatpush.bf16.msra.mxu0 %v1548
      %1660 = vmatpush.bf16.msra.mxu0 %v1546
      %1661 = vmatpush.bf16.msra.mxu0 %v1544
      %1662 = vmatpush.bf16.msra.mxu0 %v1542
      %1663 = vmatmul.bf16.gmra.mxu0 %v1118
      %v1664 = vpop.f32.mrf.mxu0
      %v1665 = vadd.f32 %v1643, %v1664
      %v1666 = vpop.f32.mrf.mxu0
      %v1667 = vadd.f32 %v1645, %v1666
      %1668 = vmatmul.bf16.gmra.mxu0 %v1120
      %v1669 = vpop.f32.mrf.mxu0
      %v1670 = vadd.f32 %v1648, %v1669
      %v1671 = vpop.f32.mrf.mxu0
      %v1672 = vadd.f32 %v1650, %v1671
      %1673 = vmatmul.bf16.gmra.mxu0 %v1122
      %v1674 = vpop.f32.mrf.mxu0
      %v1675 = vpop.f32.mrf.mxu0
      %1676 = vdwg.mxu0
      %s1677 = scalar_lea.vmem %s6, 512
      %v1678 = vld [vmem:[%s1677] sm:$0xff]
      %v1679 = vld [vmem:[%s1677 + $0x8] sm:$0xff]
      %v1680 = vld [vmem:[%s1677 + $0x10] sm:$0xff]
      %v1681 = vld [vmem:[%s1677 + $0x18] sm:$0xff]
      %v1682 = vld [vmem:[%s1677 + $0x20] sm:$0xff]
      %v1683 = vld [vmem:[%s1677 + $0x28] sm:$0xff]
      %v1684 = vld [vmem:[%s1677 + $0x30] sm:$0xff]
      %v1685 = vld [vmem:[%s1677 + $0x38] sm:$0xff]
      %v1686 = vld [vmem:[%s1677 + $0x40] sm:$0xff]
      %v1687 = vld [vmem:[%s1677 + $0x48] sm:$0xff]
      %v1688 = vld [vmem:[%s1677 + $0x50] sm:$0xff]
      %v1689 = vld [vmem:[%s1677 + $0x58] sm:$0xff]
      %v1690 = vld [vmem:[%s1677 + $0x60] sm:$0xff]
      %v1691 = vld [vmem:[%s1677 + $0x68] sm:$0xff]
      %v1692 = vld [vmem:[%s1677 + $0x70] sm:$0xff]
      %v1693 = vld [vmem:[%s1677 + $0x78] sm:$0xff]
      %v1694 = vld [vmem:[%s1677 + $0x80] sm:$0xff]
      %v1695 = vld [vmem:[%s1677 + $0x88] sm:$0xff]
      %v1696 = vld [vmem:[%s1677 + $0x90] sm:$0xff]
      %v1697 = vld [vmem:[%s1677 + $0x98] sm:$0xff]
      %v1698 = vld [vmem:[%s1677 + $0xa0] sm:$0xff]
      %v1699 = vld [vmem:[%s1677 + $0xa8] sm:$0xff]
      %v1700 = vld [vmem:[%s1677 + $0xb0] sm:$0xff]
      %v1701 = vld [vmem:[%s1677 + $0xb8] sm:$0xff]
      %v1702 = vld [vmem:[%s1677 + $0xc0] sm:$0xff]
      %v1703 = vld [vmem:[%s1677 + $0xc8] sm:$0xff]
      %v1704 = vld [vmem:[%s1677 + $0xd0] sm:$0xff]
      %v1705 = vld [vmem:[%s1677 + $0xd8] sm:$0xff]
      %v1706 = vld [vmem:[%s1677 + $0xe0] sm:$0xff]
      %v1707 = vld [vmem:[%s1677 + $0xe8] sm:$0xff]
      %v1708 = vld [vmem:[%s1677 + $0xf0] sm:$0xff]
      %v1709 = vld [vmem:[%s1677 + $0xf8] sm:$0xff]
      %v1710 = vrot.slane %v1117, 1
      %v1711 = vrot.slane %v1119, 1
      %v1712 = vsel %vm805, %v1710, %v1711
      %v1713 = vrot.slane %v1118, 1
      %v1714 = vrot.slane %v1120, 1
      %v1715 = vsel %vm805, %v1713, %v1714
      %v1716 = vrot.slane %v1121, 1
      %v1717 = vsel %vm805, %v1711, %v1716
      %v1718 = vrot.slane %v1122, 1
      %v1719 = vsel %vm805, %v1714, %v1718
      %v1758 = vunpack.c.l.b16 %v1678
      %v1759 = vunpack.c.h.b16 %v1678
      %v1760 = vunpack.c.l.b16 %v1679
      %v1761 = vunpack.c.h.b16 %v1679
      %v1762 = vunpack.c.l.b16 %v1680
      %v1763 = vunpack.c.h.b16 %v1680
      %v1764 = vunpack.c.l.b16 %v1681
      %v1765 = vunpack.c.h.b16 %v1681
      %v1766 = vunpack.c.l.b16 %v1682
      %v1767 = vunpack.c.h.b16 %v1682
      %v1768 = vunpack.c.l.b16 %v1683
      %v1769 = vunpack.c.h.b16 %v1683
      %v1770 = vunpack.c.l.b16 %v1684
      %v1771 = vunpack.c.h.b16 %v1684
      %v1772 = vunpack.c.l.b16 %v1685
      %v1773 = vunpack.c.h.b16 %v1685
      %v1774 = vunpack.c.l.b16 %v1686
      %v1775 = vunpack.c.h.b16 %v1686
      %v1776 = vunpack.c.l.b16 %v1687
      %v1777 = vunpack.c.h.b16 %v1687
      %v1778 = vunpack.c.l.b16 %v1688
      %v1779 = vunpack.c.h.b16 %v1688
      %v1780 = vunpack.c.l.b16 %v1689
      %v1781 = vunpack.c.h.b16 %v1689
      %v1782 = vunpack.c.l.b16 %v1690
      %v1783 = vunpack.c.h.b16 %v1690
      %v1784 = vunpack.c.l.b16 %v1691
      %v1785 = vunpack.c.h.b16 %v1691
      %v1786 = vunpack.c.l.b16 %v1692
      %v1787 = vunpack.c.h.b16 %v1692
      %v1788 = vunpack.c.l.b16 %v1693
      %v1789 = vunpack.c.h.b16 %v1693
      %v1790 = vunpack.c.l.b16 %v1694
      %v1791 = vunpack.c.h.b16 %v1694
      %v1792 = vunpack.c.l.b16 %v1695
      %v1793 = vunpack.c.h.b16 %v1695
      %v1794 = vunpack.c.l.b16 %v1696
      %v1795 = vunpack.c.h.b16 %v1696
      %v1796 = vunpack.c.l.b16 %v1697
      %v1797 = vunpack.c.h.b16 %v1697
      %v1798 = vunpack.c.l.b16 %v1698
      %v1799 = vunpack.c.h.b16 %v1698
      %v1800 = vunpack.c.l.b16 %v1699
      %v1801 = vunpack.c.h.b16 %v1699
      %v1802 = vunpack.c.l.b16 %v1700
      %v1803 = vunpack.c.h.b16 %v1700
      %v1804 = vunpack.c.l.b16 %v1701
      %v1805 = vunpack.c.h.b16 %v1701
      %v1806 = vunpack.c.l.b16 %v1702
      %v1807 = vunpack.c.h.b16 %v1702
      %v1808 = vunpack.c.l.b16 %v1703
      %v1809 = vunpack.c.h.b16 %v1703
      %v1810 = vunpack.c.l.b16 %v1704
      %v1811 = vunpack.c.h.b16 %v1704
      %v1812 = vunpack.c.l.b16 %v1705
      %v1813 = vunpack.c.h.b16 %v1705
      %v1814 = vunpack.c.l.b16 %v1706
      %v1815 = vunpack.c.h.b16 %v1706
      %v1816 = vunpack.c.l.b16 %v1707
      %v1817 = vunpack.c.h.b16 %v1707
      %v1818 = vunpack.c.l.b16 %v1708
      %v1819 = vunpack.c.h.b16 %v1708
      %v1820 = vunpack.c.l.b16 %v1709
      %v1821 = vunpack.c.h.b16 %v1709
      %v1822 = vpack.c.b16 %v1760, %v1758
      %v1823 = vpack.c.b16 %v1761, %v1759
      %v1824 = vpack.c.b16 %v1764, %v1762
      %v1825 = vpack.c.b16 %v1765, %v1763
      %v1826 = vpack.c.b16 %v1768, %v1766
      %v1827 = vpack.c.b16 %v1769, %v1767
      %v1828 = vpack.c.b16 %v1772, %v1770
      %v1829 = vpack.c.b16 %v1773, %v1771
      %v1830 = vpack.c.b16 %v1776, %v1774
      %v1831 = vpack.c.b16 %v1777, %v1775
      %v1832 = vpack.c.b16 %v1780, %v1778
      %v1833 = vpack.c.b16 %v1781, %v1779
      %v1834 = vpack.c.b16 %v1784, %v1782
      %v1835 = vpack.c.b16 %v1785, %v1783
      %v1836 = vpack.c.b16 %v1788, %v1786
      %v1837 = vpack.c.b16 %v1789, %v1787
      %v1838 = vpack.c.b16 %v1792, %v1790
      %v1839 = vpack.c.b16 %v1793, %v1791
      %v1840 = vpack.c.b16 %v1796, %v1794
      %v1841 = vpack.c.b16 %v1797, %v1795
      %v1842 = vpack.c.b16 %v1800, %v1798
      %v1843 = vpack.c.b16 %v1801, %v1799
      %v1844 = vpack.c.b16 %v1804, %v1802
      %v1845 = vpack.c.b16 %v1805, %v1803
      %v1846 = vpack.c.b16 %v1808, %v1806
      %v1847 = vpack.c.b16 %v1809, %v1807
      %v1848 = vpack.c.b16 %v1812, %v1810
      %v1849 = vpack.c.b16 %v1813, %v1811
      %v1850 = vpack.c.b16 %v1816, %v1814
      %v1851 = vpack.c.b16 %v1817, %v1815
      %v1852 = vpack.c.b16 %v1820, %v1818
      %v1853 = vpack.c.b16 %v1821, %v1819
      %1886 = vmatpush.bf16.msra.mxu0 %v1836
      %1887 = vmatpush.bf16.msra.mxu0 %v1834
      %1888 = vmatpush.bf16.msra.mxu0 %v1832
      %1889 = vmatpush.bf16.msra.mxu0 %v1830
      %1890 = vmatpush.bf16.msra.mxu0 %v1828
      %1891 = vmatpush.bf16.msra.mxu0 %v1826
      %1892 = vmatpush.bf16.msra.mxu0 %v1824
      %1893 = vmatpush.bf16.msra.mxu0 %v1822
      %1894 = vmatmul.bf16.gmra.mxu0 %v1712
      %v1895 = vpop.f32.mrf.mxu0
      %v1896 = vadd.f32 0.0, %v1895
      %v1897 = vpop.f32.mrf.mxu0
      %v1898 = vadd.f32 0.0, %v1897
      %1899 = vmatmul.bf16.gmra.mxu0 %v1717
      %v1900 = vpop.f32.mrf.mxu0
      %v1901 = vadd.f32 0.0, %v1900
      %v1902 = vpop.f32.mrf.mxu0
      %v1903 = vadd.f32 0.0, %v1902
      %1904 = vmatmul.bf16.gmra.mxu0 %v1716
      %v1905 = vpop.f32.mrf.mxu0
      %v1906 = vpop.f32.mrf.mxu0
      %1907 = vdwg.mxu0
      %1908 = vmatpush.bf16.msra.mxu0 %v1852
      %1909 = vmatpush.bf16.msra.mxu0 %v1850
      %1910 = vmatpush.bf16.msra.mxu0 %v1848
      %1911 = vmatpush.bf16.msra.mxu0 %v1846
      %1912 = vmatpush.bf16.msra.mxu0 %v1844
      %1913 = vmatpush.bf16.msra.mxu0 %v1842
      %1914 = vmatpush.bf16.msra.mxu0 %v1840
      %1915 = vmatpush.bf16.msra.mxu0 %v1838
      %1916 = vmatmul.bf16.gmra.mxu0 %v1715
      %v1917 = vpop.f32.mrf.mxu0
      %v1918 = vadd.f32 %v1896, %v1917
      %v1919 = vpop.f32.mrf.mxu0
      %v1920 = vadd.f32 %v1898, %v1919
      %1921 = vmatmul.bf16.gmra.mxu0 %v1719
      %v1922 = vpop.f32.mrf.mxu0
      %v1923 = vadd.f32 %v1901, %v1922
      %v1924 = vpop.f32.mrf.mxu0
      %v1925 = vadd.f32 %v1903, %v1924
      %1926 = vmatmul.bf16.gmra.mxu0 %v1718
      %v1927 = vpop.f32.mrf.mxu0
      %v1928 = vpop.f32.mrf.mxu0
      %1929 = vdwg.mxu0
      %1930 = vmatpush.bf16.msra.mxu0 %v1837
      %1931 = vmatpush.bf16.msra.mxu0 %v1835
      %1932 = vmatpush.bf16.msra.mxu0 %v1833
      %1933 = vmatpush.bf16.msra.mxu0 %v1831
      %1934 = vmatpush.bf16.msra.mxu0 %v1829
      %1935 = vmatpush.bf16.msra.mxu0 %v1827
      %1936 = vmatpush.bf16.msra.mxu0 %v1825
      %1937 = vmatpush.bf16.msra.mxu0 %v1823
      %1938 = vmatmul.bf16.gmra.mxu0 %v1712
      %v1939 = vpop.f32.mrf.mxu0
      %v1940 = vadd.f32 0.0, %v1939
      %v1941 = vpop.f32.mrf.mxu0
      %v1942 = vadd.f32 0.0, %v1941
      %1943 = vmatmul.bf16.gmra.mxu0 %v1717
      %v1944 = vpop.f32.mrf.mxu0
      %v1945 = vadd.f32 0.0, %v1944
      %v1946 = vpop.f32.mrf.mxu0
      %v1947 = vadd.f32 0.0, %v1946
      %1948 = vmatmul.bf16.gmra.mxu0 %v1716
      %v1949 = vpop.f32.mrf.mxu0
      %v1950 = vpop.f32.mrf.mxu0
      %1951 = vdwg.mxu0
      %1952 = vmatpush.bf16.msra.mxu0 %v1853
      %1953 = vmatpush.bf16.msra.mxu0 %v1851
      %1954 = vmatpush.bf16.msra.mxu0 %v1849
      %1955 = vmatpush.bf16.msra.mxu0 %v1847
      %1956 = vmatpush.bf16.msra.mxu0 %v1845
      %1957 = vmatpush.bf16.msra.mxu0 %v1843
      %1958 = vmatpush.bf16.msra.mxu0 %v1841
      %1959 = vmatpush.bf16.msra.mxu0 %v1839
      %1960 = vmatmul.bf16.gmra.mxu0 %v1715
      %v1961 = vpop.f32.mrf.mxu0
      %v1962 = vadd.f32 %v1940, %v1961
      %v1963 = vpop.f32.mrf.mxu0
      %v1964 = vadd.f32 %v1942, %v1963
      %1965 = vmatmul.bf16.gmra.mxu0 %v1719
      %v1966 = vpop.f32.mrf.mxu0
      %v1967 = vadd.f32 %v1945, %v1966
      %v1968 = vpop.f32.mrf.mxu0
      %v1969 = vadd.f32 %v1947, %v1968
      %1970 = vmatmul.bf16.gmra.mxu0 %v1718
      %v1971 = vpop.f32.mrf.mxu0
      %v1972 = vpop.f32.mrf.mxu0
      %1973 = vdwg.mxu0
      %v1974 = vadd.f32 %v1621, %v1918
      %v1975 = vadd.f32 %v1665, %v1962
      %v1976 = vadd.f32 %v1623, %v1920
      %v1977 = vadd.f32 %v1667, %v1964
      %v1978 = vadd.f32 %v1626, %v1923
      %v1979 = vadd.f32 %v1670, %v1967
      %v1980 = vadd.f32 %v1628, %v1925
      %v1981 = vadd.f32 %v1672, %v1969
      %v1982 = vld [vmem:[%s7] sm:$0x3]
      %v1984 = vperm.slane %v1982, 0
      %v1985 = vperm.slane %v1982, 1
      %v1988 = vmul.f32 %v1974, %v1984
      %v1989 = vmul.f32 %v1975, %v1985
      %v1990 = vmul.f32 %v1976, %v1984
      %v1991 = vmul.f32 %v1977, %v1985
      %v1992 = vmul.f32 %v1978, %v1984
      %v1993 = vmul.f32 %v1979, %v1985
      %v1994 = vmul.f32 %v1980, %v1984
      %v1995 = vmul.f32 %v1981, %v1985
      %v1996 = vld [vmem:[%s8] sm:$0x3]
      %v1998 = vperm.slane %v1996, 0
      %v1999 = vperm.slane %v1996, 1
      %v2002 = vadd.f32 %v1988, %v1998
      %v2003 = vadd.f32 %v1989, %v1999
      %v2004 = vadd.f32 %v1990, %v1998
      %v2005 = vadd.f32 %v1991, %v1999
      %v2006 = vadd.f32 %v1992, %v1998
      %v2007 = vadd.f32 %v1993, %v1999
      %v2008 = vadd.f32 %v1994, %v1998
      %v2009 = vadd.f32 %v1995, %v1999
      %v2010 = vmax.f32 %v2002, 0.0
      %v2011 = vmax.f32 %v2003, 0.0
      %v2012 = vmax.f32 %v2004, 0.0
      %v2013 = vmax.f32 %v2005, 0.0
      %v2014 = vmax.f32 %v2006, 0.0
      %v2015 = vmax.f32 %v2007, 0.0
      %v2016 = vmax.f32 %v2008, 0.0
      %v2017 = vmax.f32 %v2009, 0.0
      %2018 = vst [vmem:[%s361] sm:$0xff] %v2010
      %2019 = vst [vmem:[%s361 + $0x8] sm:$0xff] %v2011
      %2020 = vst [vmem:[%s361 + $0x10] sm:$0xff] %v2012
      %2021 = vst [vmem:[%s361 + $0x18] sm:$0xff] %v2013
      %2022 = vst [vmem:[%s361 + $0x20] sm:$0xff] %v2014
      %2023 = vst [vmem:[%s361 + $0x28] sm:$0xff] %v2015
      %2024 = vst [vmem:[%s361 + $0x30] sm:$0xff] %v2016
      %2025 = vst [vmem:[%s361 + $0x38] sm:$0xff] %v2017
      %p2026 = scmp.lt.s32.totalorder %s21, 1
      %s2027 = scalar_select %p2026, %s21, 1
      %s2028 = smul.addr %s2027, 8
      %s2029 = smul.addr %s2028, 8
      %s2030 = scalar_lea.vmem %s10, %s2029
      // Predicated region
      $region61: #{up_conv2d_block_forward.1} parent=59 // pred_check
        %p2031 = pneg %p254
      $region62: #{up_conv2d_block_forward.1} parent=59 // pred_check_branch
        %2033 = sbr.rel (%p2031) target = $region64
      $region63: #{up_conv2d_block_forward.1} parent=59 // pred_region
        _
      $region64: #{up_conv2d_block_forward.1} parent=59 // pred_fallthru
        _
    $region60: #{up_conv2d_block_forward.1} parent=5 // pred_fallthru
      _
    %p2034 = scmp.le.s32.totalorder 2, %s16
    // Predicated region
    $region65: #{up_conv2d_block_forward.1} parent=5 // pred_check
      %p2035 = pneg %p2034
    $region66: #{up_conv2d_block_forward.1} parent=5 // pred_check_branch
      %2037 = sbr.rel (%p2035) target = $region68
    $region67: #{up_conv2d_block_forward.1} parent=5 // pred_region
      %s2038 = ssub.s32 %s16, 2
      // Predicated region
      $region69: #{up_conv2d_block_forward.1} parent=67 // pred_check
        %p2039 = pneg %p260
      $region70: #{up_conv2d_block_forward.1} parent=67 // pred_check_branch
        %2041 = sbr.rel (%p2039) target = $region72
      $region71: #{up_conv2d_block_forward.1} parent=67 // pred_region
        %p2042 = scmp.lt.s32.totalorder %s22, 1
        %s2043 = scalar_select %p2042, %s22, 1
        %s2044 = smul.addr %s2043, 8
        %s2045 = smul.addr %s2044, 8
        %s2046 = scalar_lea.vmem %s10, %s2045
      $region72: #{up_conv2d_block_forward.1} parent=67 // pred_fallthru
        _
    $region68: #{up_conv2d_block_forward.1} parent=5 // pred_fallthru
      _
  $region6: #{up_conv2d_block_forward.1} parent=0 // loop_footer
    %s20 = sadd.s32 1, %s16
  $region7: #{up_conv2d_block_forward.1} parent=0 // loop_footer_branch
    %15 = sbr.rel target = $region3
  $region8: #{up_conv2d_block_forward.1} parent=0 // loop_exit
    _

</llo_original>
